<compile_context>
chip_gen: v5e
topology: v5e:2x2
jax: 0.10.0
libtpu: 0.0.40
codegen_flags: <defaults>
</compile_context>

<pallas_src>
import functools

import jax
import jax.numpy as jnp
from jax.experimental import pallas as pl
from jax.experimental.pallas import tpu as pltpu

_LN_EPS = 1e-5
_VMEM_LIMIT = 56 * 1024 * 1024   # <= v7x 64 MiB physical; raises v5e/v6e defaults


# ----------------------------------------------------------------------------
# helpers
# ----------------------------------------------------------------------------
def _row_tile(n, target):
    """Row tile: full array if small, else `target`."""
    return n if n <= target else target


def _divisor_chunk(total, target, align):
    """Largest chunk <= target that divides `total` and is a multiple of `align`."""
    if total <= target:
        return total
    c = (min(target, total) // align) * align
    while c >= align:
        if total % c == 0:
            return c
        c -= align
    return total


# ----------------------------------------------------------------------------
# Pallas kernels
# ----------------------------------------------------------------------------
def _layernorm_kernel(x_ref, g_ref, b_ref, o_ref):
    x = x_ref[...].astype(jnp.float32)
    mu = jnp.mean(x, axis=-1, keepdims=True)
    var = jnp.mean((x - mu) ** 2, axis=-1, keepdims=True)
    y = (x - mu) * jax.lax.rsqrt(var + _LN_EPS)
    o_ref[...] = (y * g_ref[...].astype(jnp.float32)
                  + b_ref[...].astype(jnp.float32)).astype(o_ref.dtype)


def _attn_block_kernel(x_ref, kv_ref, g_ref, b_ref, wq_ref, wk_ref, wv_ref, wo_ref,
                       o_ref, q_sc, k_sc, v_sc, ctx_sc,
                       *, num_heads, dh, ln_kv, residual_is_ln, causal):
    # x_ref : (Tq, D) query/residual tile   kv_ref : (S, D) key/value source (full S)
    # wq (scale folded) / wk / wv / wo : (D, D)      g/b : (1, D)
    # scratch: q_sc/ctx_sc (Tq, D), k_sc/v_sc (S, D) in the input dtype.
    qi = pl.program_id(1)
    g = g_ref[...].astype(jnp.float32)
    b = b_ref[...].astype(jnp.float32)

    # K/V depend only on the batch index -> compute once per batch. The KV block is
    # resident across query tiles (its index_map ignores qi) and the qi grid axis is
    # "arbitrary", so every core starts each batch at qi == 0.
    @pl.when(qi == 0)
    def _():
        kv = kv_ref[...].astype(jnp.float32)
        if ln_kv:   # self-attention: K/V come from LN(x); cross-attn uses raw enc out
            mk = jnp.mean(kv, axis=-1, keepdims=True)
            vk = jnp.mean((kv - mk) ** 2, axis=-1, keepdims=True)
            kv = (kv - mk) * jax.lax.rsqrt(vk + _LN_EPS) * g + b
        kvm = kv.astype(k_sc.dtype)
        k_sc[...] = jnp.dot(kvm, wk_ref[...],
                            preferred_element_type=jnp.float32).astype(k_sc.dtype)
        v_sc[...] = jnp.dot(kvm, wv_ref[...],
                            preferred_element_type=jnp.float32).astype(v_sc.dtype)

    # Per query tile: LayerNorm + full-width Q projection (dh**-0.5 folded into Wq).
    x = x_ref[...].astype(jnp.float32)
    mu = jnp.mean(x, axis=-1, keepdims=True)
    var = jnp.mean((x - mu) ** 2, axis=-1, keepdims=True)
    xn = (x - mu) * jax.lax.rsqrt(var + _LN_EPS) * g + b               # (Tq, D) f32

    q_sc[...] = jnp.dot(xn.astype(q_sc.dtype), wq_ref[...],
                        preferred_element_type=jnp.float32).astype(q_sc.dtype)

    Tq, _ = xn.shape
    S = kv_ref.shape[0]

    if causal:   # causal mask from index math -- no HBM mask traffic
        rows = jax.lax.broadcasted_iota(jnp.int32, (Tq, S), 0) + qi * Tq
        cols = jax.lax.broadcasted_iota(jnp.int32, (Tq, S), 1)
        bias = jnp.where(cols > rows, jnp.float32(-1e9), jnp.float32(0.0))

    # Per-head attention core (static unroll). The contraction width here is dh by
    # definition; the wide matmuls (projections) already ran at full D.
    for h in range(num_heads):
        lo, hi = h * dh, (h + 1) * dh
        qh = q_sc[:, lo:hi]                                            # (Tq, dh)
        kh = k_sc[:, lo:hi]                                            # (S, dh)
        vh = v_sc[:, lo:hi]                                            # (S, dh)
        logits = jax.lax.dot_general(qh, kh, (((1,), (1,)), ((), ())),
                                     preferred_element_type=jnp.float32)  # (Tq, S)
        if causal:
            logits = logits + bias
        logits = logits - jnp.max(logits, axis=-1, keepdims=True)
        e = jnp.exp(logits)
        p = e * pl.reciprocal(jnp.sum(e, axis=-1, keepdims=True), approx=True)
        ctx = jnp.dot(p.astype(vh.dtype), vh,
                      preferred_element_type=jnp.float32)              # (Tq, dh)
        ctx_sc[:, lo:hi] = ctx.astype(ctx_sc.dtype)

    # Single full-width output projection (K = D) + residual add.
    attn = jnp.dot(ctx_sc[...], wo_ref[...], preferred_element_type=jnp.float32)
    res = xn if residual_is_ln else x
    o_ref[...] = (res + attn).astype(o_ref.dtype)                      # lane-dense store


def _ffn_block_kernel(x_ref, g_ref, b_ref, w1_ref, b1_ref, w2_ref, b2_ref,
                      o_ref, xn_sc, acc_sc):
    # x_ref: (tm, D)  w1: (D, th)  b1: (1, th)  w2: (th, D)  b2: (1, D)
    hc = pl.program_id(1)

    @pl.when(hc == 0)
    def _():
        x = x_ref[...].astype(jnp.float32)
        mu = jnp.mean(x, axis=-1, keepdims=True)
        var = jnp.mean((x - mu) ** 2, axis=-1, keepdims=True)
        xn = ((x - mu) * jax.lax.rsqrt(var + _LN_EPS)
              * g_ref[...].astype(jnp.float32) + b_ref[...].astype(jnp.float32))
        xn_sc[...] = xn.astype(xn_sc.dtype)
        acc_sc[...] = jnp.zeros_like(acc_sc)

    h = jnp.dot(xn_sc[...], w1_ref[...],
                preferred_element_type=jnp.float32) + b1_ref[...].astype(jnp.float32)
    h = jnp.maximum(h, 0.0)
    acc_sc[...] += jnp.dot(h.astype(w2_ref.dtype), w2_ref[...],
                           preferred_element_type=jnp.float32)

    @pl.when(hc == pl.num_programs(1) - 1)
    def _():
        y = acc_sc[...] + b2_ref[...].astype(jnp.float32) + x_ref[...].astype(jnp.float32)
        o_ref[...] = y.astype(o_ref.dtype)


# ----------------------------------------------------------------------------
# Wrappers around pallas_call
# ----------------------------------------------------------------------------
def layernorm(x, gamma, beta, *, row_tile=512):
    B, T, D = x.shape
    N = B * T
    tm = _row_tile(N, row_tile)
    out = pl.pallas_call(
        _layernorm_kernel,
        out_shape=jax.ShapeDtypeStruct((N, D), x.dtype),
        grid=(pl.cdiv(N, tm),),
        in_specs=[
            pl.BlockSpec((tm, D), lambda i: (i, 0)),
            pl.BlockSpec((1, D), lambda i: (0, 0)),
            pl.BlockSpec((1, D), lambda i: (0, 0)),
        ],
        out_specs=pl.BlockSpec((tm, D), lambda i: (i, 0)),
        compiler_params=pltpu.CompilerParams(
            dimension_semantics=("parallel",),
            vmem_limit_bytes=_VMEM_LIMIT),
    )(x.reshape(N, D), gamma, beta)
    return out.reshape(B, T, D)


def fused_ln_attn_residual(x, kv, gamma, beta, wq, wk, wv, wo, num_heads,
                           *, ln_kv, residual_is_ln, causal, q_tile=256):
    """out = residual + MHA(LN(x), kv_src); kv_src = LN(x) (self) or kv (cross)."""
    B, T, D = x.shape
    _, S, _ = kv.shape
    assert D % num_heads == 0
    dh = D // num_heads

    # Fold the attention scale into Wq once per call (tiny XLA elementwise op);
    # removes a per-grid-step VPU pass over the projected queries.
    wq_s = (wq * (dh ** -0.5)).astype(wq.dtype)

    tq = _row_tile(T, q_tile)
    grid = (B, pl.cdiv(T, tq))
    kernel = functools.partial(_attn_block_kernel, num_heads=num_heads, dh=dh,
                               ln_kv=ln_kv, residual_is_ln=residual_is_ln,
                               causal=causal)

    in_specs = [
        pl.BlockSpec((None, tq, D), lambda bi, qi: (bi, qi, 0)),   # query / residual
        pl.BlockSpec((None, S, D), lambda bi, qi: (bi, 0, 0)),     # K/V source (full S)
        pl.BlockSpec((1, D), lambda bi, qi: (0, 0)),               # gamma
        pl.BlockSpec((1, D), lambda bi, qi: (0, 0)),               # beta
        pl.BlockSpec((D, D), lambda bi, qi: (0, 0)),               # Wq (pre-scaled)
        pl.BlockSpec((D, D), lambda bi, qi: (0, 0)),               # Wk
        pl.BlockSpec((D, D), lambda bi, qi: (0, 0)),               # Wv
        pl.BlockSpec((D, D), lambda bi, qi: (0, 0)),               # Wo
    ]

    itemsize = x.dtype.itemsize
    flops = int(2 * B * D * D * (2 * T + 2 * S) + 4 * B * T * S * D)
    bytes_accessed = int((2 * B * T * D + B * S * D + 4 * D * D + 4 * D) * itemsize)

    return pl.pallas_call(
        kernel,
        out_shape=jax.ShapeDtypeStruct((B, T, D), x.dtype),
        grid=grid,
        in_specs=in_specs,
        out_specs=pl.BlockSpec((None, tq, D), lambda bi, qi: (bi, qi, 0)),
        scratch_shapes=[pltpu.VMEM((tq, D), x.dtype),    # Q projection
                        pltpu.VMEM((S, D), x.dtype),     # K projection (per batch)
                        pltpu.VMEM((S, D), x.dtype),     # V projection (per batch)
                        pltpu.VMEM((tq, D), x.dtype)],   # per-head context assembly
        compiler_params=pltpu.CompilerParams(
            dimension_semantics=("parallel", "arbitrary"),
            vmem_limit_bytes=_VMEM_LIMIT),
        cost_estimate=pl.CostEstimate(flops=flops,
                                      transcendentals=int(B * num_heads * T * S),
                                      bytes_accessed=bytes_accessed),
    )(x, kv, gamma, beta, wq_s, wk, wv, wo)


def fused_ln_ffn_residual(x, gamma, beta, w1, b1, w2, b2,
                          *, row_tile=512, hidden_chunk=1024):
    """out = x + W2 @ relu(W1 @ LN(x) + b1) + b2, tiled over rows and hidden chunks."""
    B, T, D = x.shape
    N = B * T
    H4 = w1.shape[1]
    tm = _row_tile(N, row_tile)
    th = _divisor_chunk(H4, hidden_chunk, 128)

    itemsize = x.dtype.itemsize
    flops = int(4 * N * D * H4)
    bytes_accessed = int((2 * N * D + 2 * D * H4 * pl.cdiv(N, tm)) * itemsize)

    out = pl.pallas_call(
        _ffn_block_kernel,
        out_shape=jax.ShapeDtypeStruct((N, D), x.dtype),
        grid=(pl.cdiv(N, tm), H4 // th),
        in_specs=[
            pl.BlockSpec((tm, D), lambda i, j: (i, 0)),      # resident row tile
            pl.BlockSpec((1, D), lambda i, j: (0, 0)),
            pl.BlockSpec((1, D), lambda i, j: (0, 0)),
            pl.BlockSpec((D, th), lambda i, j: (0, j)),      # W1 hidden chunk
            pl.BlockSpec((1, th), lambda i, j: (0, j)),
            pl.BlockSpec((th, D), lambda i, j: (j, 0)),      # W2 hidden chunk
            pl.BlockSpec((1, D), lambda i, j: (0, 0)),
        ],
        out_specs=pl.BlockSpec((tm, D), lambda i, j: (i, 0)),
        scratch_shapes=[pltpu.VMEM((tm, D), x.dtype),        # LN(x) cache (matmul dtype)
                        pltpu.VMEM((tm, D), jnp.float32)],   # f32 accumulator
        compiler_params=pltpu.CompilerParams(
            dimension_semantics=("parallel", "arbitrary"),
            vmem_limit_bytes=_VMEM_LIMIT),
        cost_estimate=pl.CostEstimate(flops=flops, transcendentals=0,
                                      bytes_accessed=bytes_accessed),
    )(x.reshape(N, D), gamma, beta, w1, b1, w2, b2)
    return out.reshape(B, T, D)


# ----------------------------------------------------------------------------
# TransformerDecoder forward (mirrors the PyTorch module, dropout = 0)
# ----------------------------------------------------------------------------
def transformer_decoder_forward(params, inp, encoder_output, num_heads):
    x = inp
    for bi, blk in enumerate(params["blocks"]):
        # self-attention (first block adds the residual onto the post-LN tensor)
        x = fused_ln_attn_residual(
            x, x, blk["ln1_g"], blk["ln1_b"],
            blk["sa_wq"], blk["sa_wk"], blk["sa_wv"], blk["sa_wo"], num_heads,
            ln_kv=True, residual_is_ln=(bi == 0), causal=True)
        # cross-attention (no mask, encoder output not normalized)
        x = fused_ln_attn_residual(
            x, encoder_output, blk["ln2_g"], blk["ln2_b"],
            blk["ca_wq"], blk["ca_wk"], blk["ca_wv"], blk["ca_wo"], num_heads,
            ln_kv=False, residual_is_ln=False, causal=False)
        # feed-forward
        x = fused_ln_ffn_residual(
            x, blk["ln3_g"], blk["ln3_b"],
            blk["ffn_w1"], blk["ffn_b1"], blk["ffn_w2"], blk["ffn_b2"])
    return layernorm(x, params["lnf_g"], params["lnf_b"])


# ----------------------------------------------------------------------------
# Pure-JAX reference (same params / same math) for a sanity check
# ----------------------------------------------------------------------------
def _ref_ln(x, g, b):
    m = jnp.mean(x, axis=-1, keepdims=True)
    v = jnp.mean((x - m) ** 2, axis=-1, keepdims=True)
    return (x - m) * jax.lax.rsqrt(v + _LN_EPS) * g + b


def _ref_mha(q, kv, mask, wq, wk, wv, wo, num_heads):
    B, T, D = q.shape
    _, S, _ = kv.shape
    dh = D // num_heads
    qp = (q @ wq).reshape(B, T, num_heads, dh).transpose(0, 2, 1, 3)
    kp = (kv @ wk).reshape(B, S, num_heads, dh).transpose(0, 2, 1, 3)
    vp = (kv @ wv).reshape(B, S, num_heads, dh).transpose(0, 2, 1, 3)
    logits = jnp.einsum("bhtd,bhsd->bhts", qp * dh ** -0.5, kp) + mask
    p = jax.nn.softmax(logits, axis=-1)
    o = jnp.einsum("bhts,bhsd->bhtd", p, vp).transpose(0, 2, 1, 3).reshape(B, T, D)
    return o @ wo


def _ref_forward(params, inp, enc, num_heads):
    B, T, D = inp.shape
    _, S, _ = enc.shape
    cm = params["causal_mask"][:T, :T]
    zm = jnp.zeros((T, S), inp.dtype)
    x = inp
    for bi, blk in enumerate(params["blocks"]):
        if bi == 0:
            x = _ref_ln(x, blk["ln1_g"], blk["ln1_b"])
            x = x + _ref_mha(x, x, cm, blk["sa_wq"], blk["sa_wk"],
                             blk["sa_wv"], blk["sa_wo"], num_heads)
        else:
            h = _ref_ln(x, blk["ln1_g"], blk["ln1_b"])
            x = x + _ref_mha(h, h, cm, blk["sa_wq"], blk["sa_wk"],
                             blk["sa_wv"], blk["sa_wo"], num_heads)
        h = _ref_ln(x, blk["ln2_g"], blk["ln2_b"])
        x = x + _ref_mha(h, enc, zm, blk["ca_wq"], blk["ca_wk"],
                         blk["ca_wv"], blk["ca_wo"], num_heads)
        h = _ref_ln(x, blk["ln3_g"], blk["ln3_b"])
        f = jnp.maximum(h @ blk["ffn_w1"] + blk["ffn_b1"], 0.0) @ blk["ffn_w2"] \
            + blk["ffn_b2"]
        x = x + f
    return _ref_ln(x, params["lnf_g"], params["lnf_b"])


# ----------------------------------------------------------------------------
# Deterministic parameter init (synthetic; shapes match the PyTorch __init__)
# ----------------------------------------------------------------------------
def init_params(key, num_blocks, max_len, d_model):
    gain = (3 * num_blocks) ** (-0.5)
    dtype = jnp.float32
    params = {"blocks": []}
    for _ in range(num_blocks):
        keys = jax.random.split(key, 11)
        key = keys[0]
        scale = d_model ** -0.5
        blk = {
            "ln1_g": jnp.ones((1, d_model), dtype),
            "ln1_b": jnp.zeros((1, d_model), dtype),
            "sa_wq": jax.random.normal(keys[1], (d_model, d_model), dtype) * scale,
            "sa_wk": jax.random.normal(keys[2], (d_model, d_model), dtype) * scale,
            "sa_wv": jax.random.normal(keys[3], (d_model, d_model), dtype) * scale,
            "sa_wo": jax.random.normal(keys[4], (d_model, d_model), dtype) * scale * gain,
            "ln2_g": jnp.ones((1, d_model), dtype),
            "ln2_b": jnp.zeros((1, d_model), dtype),
            "ca_wq": jax.random.normal(keys[5], (d_model, d_model), dtype) * scale,
            "ca_wk": jax.random.normal(keys[6], (d_model, d_model), dtype) * scale,
            "ca_wv": jax.random.normal(keys[7], (d_model, d_model), dtype) * scale,
            "ca_wo": jax.random.normal(keys[8], (d_model, d_model), dtype) * scale * gain,
            "ln3_g": jnp.ones((1, d_model), dtype),
            "ln3_b": jnp.zeros((1, d_model), dtype),
            "ffn_w1": jax.random.normal(keys[9], (d_model, 4 * d_model), dtype) * scale,
            "ffn_b1": jnp.zeros((1, 4 * d_model), dtype),
            "ffn_w2": jax.random.normal(keys[10], (4 * d_model, d_model), dtype)
                      * (4 * d_model) ** -0.5 * gain,
            "ffn_b2": jnp.zeros((1, d_model), dtype),
        }
        params["blocks"].append(blk)
    params["lnf_g"] = jnp.ones((1, d_model), dtype)
    params["lnf_b"] = jnp.zeros((1, d_model), dtype)
    # causal mask: True above diagonal -> additive -1e9 (matches masked_fill(-inf));
    # used only by the pure-JAX reference (the kernel builds it from iota in-kernel).
    causal_bool = jnp.triu(jnp.ones((max_len, max_len), dtype=bool), k=1)
    params["causal_mask"] = jnp.where(causal_bool, jnp.float32(-1e9), jnp.float32(0.0))
    return params


# ----------------------------------------------------------------------------
# main
# ----------------------------------------------------------------------------
if __name__ == "__main__":
    num_blocks = 2
    max_len = 8
    d_model = 32
    num_heads = 4
    B, T, S = 2, 8, 8

    key = jax.random.PRNGKey(0)
    k_in, k_enc, k_params = jax.random.split(key, 3)
    inp = jax.random.normal(k_in, (B, T, d_model), jnp.float32)
    enc = jax.random.normal(k_enc, (B, S, d_model), jnp.float32)
    params = init_params(k_params, num_blocks, max_len, d_model)

    out = transformer_decoder_forward(params, inp, enc, num_heads)
    out = jax.block_until_ready(out)

    ref = _ref_forward(params, inp, enc, num_heads)
    assert out.shape == (B, T, d_model)
    # Tolerance covers the approximate (EUP) reciprocal in the softmax denominator.
    assert jnp.allclose(out, ref, atol=2e-3, rtol=2e-3), "mismatch vs JAX reference"

    print("KERNEL_OK")
</pallas_src>

<mosaic_0001>
module attributes {stable_mosaic.version = 11 : i64} {
  func.func @_attn_block_kernel(%arg0: i32, %arg1: i32, %arg2: memref<1x8x32xf32, #tpu.memory_space<vmem>>, %arg3: memref<1x8x32xf32, #tpu.memory_space<vmem>>, %arg4: memref<1x32xf32, #tpu.memory_space<vmem>>, %arg5: memref<1x32xf32, #tpu.memory_space<vmem>>, %arg6: memref<32x32xf32, #tpu.memory_space<vmem>>, %arg7: memref<32x32xf32, #tpu.memory_space<vmem>>, %arg8: memref<32x32xf32, #tpu.memory_space<vmem>>, %arg9: memref<32x32xf32, #tpu.memory_space<vmem>>, %arg10: memref<1x8x32xf32, #tpu.memory_space<vmem>>, %arg11: memref<8x32xf32, #tpu.memory_space<vmem>>, %arg12: memref<8x32xf32, #tpu.memory_space<vmem>>, %arg13: memref<8x32xf32, #tpu.memory_space<vmem>>, %arg14: memref<8x32xf32, #tpu.memory_space<vmem>>) attributes {dimension_semantics = [#tpu.dimension_semantics<parallel>, #tpu.dimension_semantics<arbitrary>], iteration_bounds = array<i64: 2, 1>, scalar_prefetch = 0 : i64, scratch_operands = 4 : i64, tpu.core_type = #tpu.core_type<tc>, window_params = [{transform_indices = @transform_0, window_bounds = array<i64: 1, 8, 32>}, {transform_indices = @transform_1, window_bounds = array<i64: 1, 8, 32>}, {pipeline_mode = #tpu.pipeline_mode<synchronous>, transform_indices = @transform_2, window_bounds = array<i64: 1, 32>}, {pipeline_mode = #tpu.pipeline_mode<synchronous>, transform_indices = @transform_3, window_bounds = array<i64: 1, 32>}, {pipeline_mode = #tpu.pipeline_mode<synchronous>, transform_indices = @transform_4, window_bounds = array<i64: 32, 32>}, {pipeline_mode = #tpu.pipeline_mode<synchronous>, transform_indices = @transform_5, window_bounds = array<i64: 32, 32>}, {pipeline_mode = #tpu.pipeline_mode<synchronous>, transform_indices = @transform_6, window_bounds = array<i64: 32, 32>}, {pipeline_mode = #tpu.pipeline_mode<synchronous>, transform_indices = @transform_7, window_bounds = array<i64: 32, 32>}, {transform_indices = @transform_8, window_bounds = array<i64: 1, 8, 32>}]} {
    %c0 = arith.constant 0 : index
    %c0_0 = arith.constant 0 : index
    %0 = vector.load %arg4[%c0, %c0_0] : memref<1x32xf32, #tpu.memory_space<vmem>>, vector<1x32xf32>
    %c0_1 = arith.constant 0 : index
    %c0_2 = arith.constant 0 : index
    %1 = vector.load %arg5[%c0_1, %c0_2] : memref<1x32xf32, #tpu.memory_space<vmem>>, vector<1x32xf32>
    %c0_i32 = arith.constant 0 : i32
    %2 = arith.cmpi eq, %arg1, %c0_i32 : i32
    %3 = arith.extui %2 : i1 to i32
    %c0_i32_3 = arith.constant 0 : i32
    %4 = arith.cmpi ne, %3, %c0_i32_3 : i32
    scf.if %4 {
      %c0_71 = arith.constant 0 : index
      %c0_72 = arith.constant 0 : index
      %c0_73 = arith.constant 0 : index
      %116 = vector.load %arg3[%c0_71, %c0_72, %c0_73] : memref<1x8x32xf32, #tpu.memory_space<vmem>>, vector<1x8x32xf32>
      %117 = vector.shape_cast %116 : vector<1x8x32xf32> to vector<8x32xf32>
      %cst_74 = arith.constant dense<0.000000e+00> : vector<8xf32>
      %118 = vector.multi_reduction <add>, %117, %cst_74 [1] : vector<8x32xf32> to vector<8xf32>
      %119 = vector.shape_cast %118 : vector<8xf32> to vector<8x1xf32>
      %cst_75 = arith.constant 3.200000e+01 : f32
      %120 = vector.broadcast %cst_75 : f32 to vector<8x1xf32>
      %121 = arith.divf %119, %120 : vector<8x1xf32>
      %122 = vector.broadcast %121 : vector<8x1xf32> to vector<8x32xf32>
      %123 = arith.subf %117, %122 : vector<8x32xf32>
      %124 = arith.mulf %123, %123 : vector<8x32xf32>
      %cst_76 = arith.constant dense<0.000000e+00> : vector<8xf32>
      %125 = vector.multi_reduction <add>, %124, %cst_76 [1] : vector<8x32xf32> to vector<8xf32>
      %126 = vector.shape_cast %125 : vector<8xf32> to vector<8x1xf32>
      %cst_77 = arith.constant 3.200000e+01 : f32
      %127 = vector.broadcast %cst_77 : f32 to vector<8x1xf32>
      %128 = arith.divf %126, %127 : vector<8x1xf32>
      %129 = vector.broadcast %121 : vector<8x1xf32> to vector<8x32xf32>
      %130 = arith.subf %117, %129 : vector<8x32xf32>
      %cst_78 = arith.constant 9.99999974E-6 : f32
      %131 = vector.broadcast %cst_78 : f32 to vector<8x1xf32>
      %132 = arith.addf %128, %131 : vector<8x1xf32>
      %133 = math.rsqrt %132 : vector<8x1xf32>
      %134 = vector.broadcast %133 : vector<8x1xf32> to vector<8x32xf32>
      %135 = arith.mulf %130, %134 : vector<8x32xf32>
      %136 = vector.broadcast %0 : vector<1x32xf32> to vector<8x32xf32>
      %137 = arith.mulf %135, %136 : vector<8x32xf32>
      %138 = vector.broadcast %1 : vector<1x32xf32> to vector<8x32xf32>
      %139 = arith.addf %137, %138 : vector<8x32xf32>
      %c0_79 = arith.constant 0 : index
      %c0_80 = arith.constant 0 : index
      %140 = vector.load %arg7[%c0_79, %c0_80] : memref<32x32xf32, #tpu.memory_space<vmem>>, vector<32x32xf32>
      %cst_81 = arith.constant dense<0.000000e+00> : vector<8x32xf32>
      %141 = tpu.matmul %139, %140, %cst_81 {dimension_numbers = #tpu.dot_dimension_numbers<[1], [0], [0], [1], [0, 0, 1, 1], [], []>} : vector<8x32xf32>, vector<32x32xf32>, vector<8x32xf32> -> vector<8x32xf32>
      %c0_82 = arith.constant 0 : index
      %c0_83 = arith.constant 0 : index
      %142 = vector.load %arg12[%c0_82, %c0_83] : memref<8x32xf32, #tpu.memory_space<vmem>>, vector<8x32xf32>
      tpu.vector_store %arg12[%c0_82, %c0_83], %141 {strides = array<i32>} : memref<8x32xf32, #tpu.memory_space<vmem>>, vector<8x32xf32>,
      %c0_84 = arith.constant 0 : index
      %c0_85 = arith.constant 0 : index
      %143 = vector.load %arg8[%c0_84, %c0_85] : memref<32x32xf32, #tpu.memory_space<vmem>>, vector<32x32xf32>
      %cst_86 = arith.constant dense<0.000000e+00> : vector<8x32xf32>
      %144 = tpu.matmul %139, %143, %cst_86 {dimension_numbers = #tpu.dot_dimension_numbers<[1], [0], [0], [1], [0, 0, 1, 1], [], []>} : vector<8x32xf32>, vector<32x32xf32>, vector<8x32xf32> -> vector<8x32xf32>
      %c0_87 = arith.constant 0 : index
      %c0_88 = arith.constant 0 : index
      %145 = vector.load %arg13[%c0_87, %c0_88] : memref<8x32xf32, #tpu.memory_space<vmem>>, vector<8x32xf32>
      tpu.vector_store %arg13[%c0_87, %c0_88], %144 {strides = array<i32>} : memref<8x32xf32, #tpu.memory_space<vmem>>, vector<8x32xf32>,
    } else {
    }
    %c0_4 = arith.constant 0 : index
    %c0_5 = arith.constant 0 : index
    %c0_6 = arith.constant 0 : index
    %5 = vector.load %arg2[%c0_4, %c0_5, %c0_6] : memref<1x8x32xf32, #tpu.memory_space<vmem>>, vector<1x8x32xf32>
    %6 = vector.shape_cast %5 : vector<1x8x32xf32> to vector<8x32xf32>
    %cst = arith.constant dense<0.000000e+00> : vector<8xf32>
    %7 = vector.multi_reduction <add>, %6, %cst [1] : vector<8x32xf32> to vector<8xf32>
    %8 = vector.shape_cast %7 : vector<8xf32> to vector<8x1xf32>
    %cst_7 = arith.constant 3.200000e+01 : f32
    %9 = vector.broadcast %cst_7 : f32 to vector<8x1xf32>
    %10 = arith.divf %8, %9 : vector<8x1xf32>
    %11 = vector.broadcast %10 : vector<8x1xf32> to vector<8x32xf32>
    %12 = arith.subf %6, %11 : vector<8x32xf32>
    %13 = arith.mulf %12, %12 : vector<8x32xf32>
    %cst_8 = arith.constant dense<0.000000e+00> : vector<8xf32>
    %14 = vector.multi_reduction <add>, %13, %cst_8 [1] : vector<8x32xf32> to vector<8xf32>
    %15 = vector.shape_cast %14 : vector<8xf32> to vector<8x1xf32>
    %cst_9 = arith.constant 3.200000e+01 : f32
    %16 = vector.broadcast %cst_9 : f32 to vector<8x1xf32>
    %17 = arith.divf %15, %16 : vector<8x1xf32>
    %18 = vector.broadcast %10 : vector<8x1xf32> to vector<8x32xf32>
    %19 = arith.subf %6, %18 : vector<8x32xf32>
    %cst_10 = arith.constant 9.99999974E-6 : f32
    %20 = vector.broadcast %cst_10 : f32 to vector<8x1xf32>
    %21 = arith.addf %17, %20 : vector<8x1xf32>
    %22 = math.rsqrt %21 : vector<8x1xf32>
    %23 = vector.broadcast %22 : vector<8x1xf32> to vector<8x32xf32>
    %24 = arith.mulf %19, %23 : vector<8x32xf32>
    %25 = vector.broadcast %0 : vector<1x32xf32> to vector<8x32xf32>
    %26 = arith.mulf %24, %25 : vector<8x32xf32>
    %27 = vector.broadcast %1 : vector<1x32xf32> to vector<8x32xf32>
    %28 = arith.addf %26, %27 : vector<8x32xf32>
    %c0_11 = arith.constant 0 : index
    %c0_12 = arith.constant 0 : index
    %29 = vector.load %arg6[%c0_11, %c0_12] : memref<32x32xf32, #tpu.memory_space<vmem>>, vector<32x32xf32>
    %cst_13 = arith.constant dense<0.000000e+00> : vector<8x32xf32>
    %30 = tpu.matmul %28, %29, %cst_13 {dimension_numbers = #tpu.dot_dimension_numbers<[1], [0], [0], [1], [0, 0, 1, 1], [], []>} : vector<8x32xf32>, vector<32x32xf32>, vector<8x32xf32> -> vector<8x32xf32>
    %c0_14 = arith.constant 0 : index
    %c0_15 = arith.constant 0 : index
    %31 = vector.load %arg11[%c0_14, %c0_15] : memref<8x32xf32, #tpu.memory_space<vmem>>, vector<8x32xf32>
    tpu.vector_store %arg11[%c0_14, %c0_15], %30 {strides = array<i32>} : memref<8x32xf32, #tpu.memory_space<vmem>>, vector<8x32xf32>,
    %32 = tpu.iota {dimensions = array<i32: 0>} : vector<8x8xi32>
    %c8_i32 = arith.constant 8 : i32
    %33 = arith.muli %arg1, %c8_i32 : i32
    %34 = vector.broadcast %33 : i32 to vector<8x8xi32>
    %35 = arith.addi %32, %34 : vector<8x8xi32>
    %36 = tpu.iota {dimensions = array<i32: 1>} : vector<8x8xi32>
    %37 = arith.cmpi sgt, %36, %35 : vector<8x8xi32>
    %cst_16 = arith.constant -1.000000e+09 : f32
    %cst_17 = arith.constant 0.000000e+00 : f32
    %38 = vector.broadcast %cst_16 : f32 to vector<8x8xf32>
    %39 = vector.broadcast %cst_17 : f32 to vector<8x8xf32>
    %40 = arith.select %37, %38, %39 : vector<8x8xi1>, vector<8x8xf32>
    %c0_18 = arith.constant 0 : index
    %c0_19 = arith.constant 0 : index
    %41 = vector.load %arg11[%c0_18, %c0_19] : memref<8x32xf32, #tpu.memory_space<vmem>>, vector<8x8xf32>
    %c0_20 = arith.constant 0 : index
    %c0_21 = arith.constant 0 : index
    %42 = vector.load %arg12[%c0_20, %c0_21] : memref<8x32xf32, #tpu.memory_space<vmem>>, vector<8x8xf32>
    %c0_22 = arith.constant 0 : index
    %c0_23 = arith.constant 0 : index
    %43 = vector.load %arg13[%c0_22, %c0_23] : memref<8x32xf32, #tpu.memory_space<vmem>>, vector<8x8xf32>
    %cst_24 = arith.constant dense<0.000000e+00> : vector<8x8xf32>
    %44 = tpu.matmul %41, %42, %cst_24 {dimension_numbers = #tpu.dot_dimension_numbers<[1], [1], [0], [0], [0, 0, 1, 0], [], []>} : vector<8x8xf32>, vector<8x8xf32>, vector<8x8xf32> -> vector<8x8xf32>
    %45 = arith.addf %44, %40 : vector<8x8xf32>
    %cst_25 = arith.constant dense<0xFF800000> : vector<8xf32>
    %46 = vector.multi_reduction <maximumf>, %45, %cst_25 [1] : vector<8x8xf32> to vector<8xf32>
    %47 = vector.shape_cast %46 : vector<8xf32> to vector<8x1xf32>
    %48 = vector.broadcast %47 : vector<8x1xf32> to vector<8x8xf32>
    %49 = arith.subf %45, %48 : vector<8x8xf32>
    %50 = math.exp %49 : vector<8x8xf32>
    %cst_26 = arith.constant dense<0.000000e+00> : vector<8xf32>
    %51 = vector.multi_reduction <add>, %50, %cst_26 [1] : vector<8x8xf32> to vector<8xf32>
    %52 = vector.shape_cast %51 : vector<8xf32> to vector<8x1xf32>
    %53 = tpu.reciprocal %52 {approx = true} : vector<8x1xf32> -> vector<8x1xf32>
    %54 = vector.broadcast %53 : vector<8x1xf32> to vector<8x8xf32>
    %55 = arith.mulf %50, %54 : vector<8x8xf32>
    %cst_27 = arith.constant dense<0.000000e+00> : vector<8x8xf32>
    %56 = tpu.matmul %55, %43, %cst_27 {dimension_numbers = #tpu.dot_dimension_numbers<[1], [0], [0], [1], [0, 0, 1, 1], [], []>} : vector<8x8xf32>, vector<8x8xf32>, vector<8x8xf32> -> vector<8x8xf32>
    %c0_28 = arith.constant 0 : index
    %c0_29 = arith.constant 0 : index
    %57 = vector.load %arg14[%c0_28, %c0_29] : memref<8x32xf32, #tpu.memory_space<vmem>>, vector<8x8xf32>
    tpu.vector_store %arg14[%c0_28, %c0_29], %56 {strides = array<i32>} : memref<8x32xf32, #tpu.memory_space<vmem>>, vector<8x8xf32>,
    %c0_30 = arith.constant 0 : index
    %c8 = arith.constant 8 : index
    %58 = vector.load %arg11[%c0_30, %c8] : memref<8x32xf32, #tpu.memory_space<vmem>>, vector<8x8xf32>
    %c0_31 = arith.constant 0 : index
    %c8_32 = arith.constant 8 : index
    %59 = vector.load %arg12[%c0_31, %c8_32] : memref<8x32xf32, #tpu.memory_space<vmem>>, vector<8x8xf32>
    %c0_33 = arith.constant 0 : index
    %c8_34 = arith.constant 8 : index
    %60 = vector.load %arg13[%c0_33, %c8_34] : memref<8x32xf32, #tpu.memory_space<vmem>>, vector<8x8xf32>
    %cst_35 = arith.constant dense<0.000000e+00> : vector<8x8xf32>
    %61 = tpu.matmul %58, %59, %cst_35 {dimension_numbers = #tpu.dot_dimension_numbers<[1], [1], [0], [0], [0, 0, 1, 0], [], []>} : vector<8x8xf32>, vector<8x8xf32>, vector<8x8xf32> -> vector<8x8xf32>
    %62 = arith.addf %61, %40 : vector<8x8xf32>
    %cst_36 = arith.constant dense<0xFF800000> : vector<8xf32>
    %63 = vector.multi_reduction <maximumf>, %62, %cst_36 [1] : vector<8x8xf32> to vector<8xf32>
    %64 = vector.shape_cast %63 : vector<8xf32> to vector<8x1xf32>
    %65 = vector.broadcast %64 : vector<8x1xf32> to vector<8x8xf32>
    %66 = arith.subf %62, %65 : vector<8x8xf32>
    %67 = math.exp %66 : vector<8x8xf32>
    %cst_37 = arith.constant dense<0.000000e+00> : vector<8xf32>
    %68 = vector.multi_reduction <add>, %67, %cst_37 [1] : vector<8x8xf32> to vector<8xf32>
    %69 = vector.shape_cast %68 : vector<8xf32> to vector<8x1xf32>
    %70 = tpu.reciprocal %69 {approx = true} : vector<8x1xf32> -> vector<8x1xf32>
    %71 = vector.broadcast %70 : vector<8x1xf32> to vector<8x8xf32>
    %72 = arith.mulf %67, %71 : vector<8x8xf32>
    %cst_38 = arith.constant dense<0.000000e+00> : vector<8x8xf32>
    %73 = tpu.matmul %72, %60, %cst_38 {dimension_numbers = #tpu.dot_dimension_numbers<[1], [0], [0], [1], [0, 0, 1, 1], [], []>} : vector<8x8xf32>, vector<8x8xf32>, vector<8x8xf32> -> vector<8x8xf32>
    %c0_39 = arith.constant 0 : index
    %c8_40 = arith.constant 8 : index
    %74 = vector.load %arg14[%c0_39, %c8_40] : memref<8x32xf32, #tpu.memory_space<vmem>>, vector<8x8xf32>
    tpu.vector_store %arg14[%c0_39, %c8_40], %73 {strides = array<i32>} : memref<8x32xf32, #tpu.memory_space<vmem>>, vector<8x8xf32>,
    %c0_41 = arith.constant 0 : index
    %c16 = arith.constant 16 : index
    %75 = vector.load %arg11[%c0_41, %c16] : memref<8x32xf32, #tpu.memory_space<vmem>>, vector<8x8xf32>
    %c0_42 = arith.constant 0 : index
    %c16_43 = arith.constant 16 : index
    %76 = vector.load %arg12[%c0_42, %c16_43] : memref<8x32xf32, #tpu.memory_space<vmem>>, vector<8x8xf32>
    %c0_44 = arith.constant 0 : index
    %c16_45 = arith.constant 16 : index
    %77 = vector.load %arg13[%c0_44, %c16_45] : memref<8x32xf32, #tpu.memory_space<vmem>>, vector<8x8xf32>
    %cst_46 = arith.constant dense<0.000000e+00> : vector<8x8xf32>
    %78 = tpu.matmul %75, %76, %cst_46 {dimension_numbers = #tpu.dot_dimension_numbers<[1], [1], [0], [0], [0, 0, 1, 0], [], []>} : vector<8x8xf32>, vector<8x8xf32>, vector<8x8xf32> -> vector<8x8xf32>
    %79 = arith.addf %78, %40 : vector<8x8xf32>
    %cst_47 = arith.constant dense<0xFF800000> : vector<8xf32>
    %80 = vector.multi_reduction <maximumf>, %79, %cst_47 [1] : vector<8x8xf32> to vector<8xf32>
    %81 = vector.shape_cast %80 : vector<8xf32> to vector<8x1xf32>
    %82 = vector.broadcast %81 : vector<8x1xf32> to vector<8x8xf32>
    %83 = arith.subf %79, %82 : vector<8x8xf32>
    %84 = math.exp %83 : vector<8x8xf32>
    %cst_48 = arith.constant dense<0.000000e+00> : vector<8xf32>
    %85 = vector.multi_reduction <add>, %84, %cst_48 [1] : vector<8x8xf32> to vector<8xf32>
    %86 = vector.shape_cast %85 : vector<8xf32> to vector<8x1xf32>
    %87 = tpu.reciprocal %86 {approx = true} : vector<8x1xf32> -> vector<8x1xf32>
    %88 = vector.broadcast %87 : vector<8x1xf32> to vector<8x8xf32>
    %89 = arith.mulf %84, %88 : vector<8x8xf32>
    %cst_49 = arith.constant dense<0.000000e+00> : vector<8x8xf32>
    %90 = tpu.matmul %89, %77, %cst_49 {dimension_numbers = #tpu.dot_dimension_numbers<[1], [0], [0], [1], [0, 0, 1, 1], [], []>} : vector<8x8xf32>, vector<8x8xf32>, vector<8x8xf32> -> vector<8x8xf32>
    %c0_50 = arith.constant 0 : index
    %c16_51 = arith.constant 16 : index
    %91 = vector.load %arg14[%c0_50, %c16_51] : memref<8x32xf32, #tpu.memory_space<vmem>>, vector<8x8xf32>
    tpu.vector_store %arg14[%c0_50, %c16_51], %90 {strides = array<i32>} : memref<8x32xf32, #tpu.memory_space<vmem>>, vector<8x8xf32>,
    %c0_52 = arith.constant 0 : index
    %c24 = arith.constant 24 : index
    %92 = vector.load %arg11[%c0_52, %c24] : memref<8x32xf32, #tpu.memory_space<vmem>>, vector<8x8xf32>
    %c0_53 = arith.constant 0 : index
    %c24_54 = arith.constant 24 : index
    %93 = vector.load %arg12[%c0_53, %c24_54] : memref<8x32xf32, #tpu.memory_space<vmem>>, vector<8x8xf32>
    %c0_55 = arith.constant 0 : index
    %c24_56 = arith.constant 24 : index
    %94 = vector.load %arg13[%c0_55, %c24_56] : memref<8x32xf32, #tpu.memory_space<vmem>>, vector<8x8xf32>
    %cst_57 = arith.constant dense<0.000000e+00> : vector<8x8xf32>
    %95 = tpu.matmul %92, %93, %cst_57 {dimension_numbers = #tpu.dot_dimension_numbers<[1], [1], [0], [0], [0, 0, 1, 0], [], []>} : vector<8x8xf32>, vector<8x8xf32>, vector<8x8xf32> -> vector<8x8xf32>
    %96 = arith.addf %95, %40 : vector<8x8xf32>
    %cst_58 = arith.constant dense<0xFF800000> : vector<8xf32>
    %97 = vector.multi_reduction <maximumf>, %96, %cst_58 [1] : vector<8x8xf32> to vector<8xf32>
    %98 = vector.shape_cast %97 : vector<8xf32> to vector<8x1xf32>
    %99 = vector.broadcast %98 : vector<8x1xf32> to vector<8x8xf32>
    %100 = arith.subf %96, %99 : vector<8x8xf32>
    %101 = math.exp %100 : vector<8x8xf32>
    %cst_59 = arith.constant dense<0.000000e+00> : vector<8xf32>
    %102 = vector.multi_reduction <add>, %101, %cst_59 [1] : vector<8x8xf32> to vector<8xf32>
    %103 = vector.shape_cast %102 : vector<8xf32> to vector<8x1xf32>
    %104 = tpu.reciprocal %103 {approx = true} : vector<8x1xf32> -> vector<8x1xf32>
    %105 = vector.broadcast %104 : vector<8x1xf32> to vector<8x8xf32>
    %106 = arith.mulf %101, %105 : vector<8x8xf32>
    %cst_60 = arith.constant dense<0.000000e+00> : vector<8x8xf32>
    %107 = tpu.matmul %106, %94, %cst_60 {dimension_numbers = #tpu.dot_dimension_numbers<[1], [0], [0], [1], [0, 0, 1, 1], [], []>} : vector<8x8xf32>, vector<8x8xf32>, vector<8x8xf32> -> vector<8x8xf32>
    %c0_61 = arith.constant 0 : index
    %c24_62 = arith.constant 24 : index
    %108 = vector.load %arg14[%c0_61, %c24_62] : memref<8x32xf32, #tpu.memory_space<vmem>>, vector<8x8xf32>
    tpu.vector_store %arg14[%c0_61, %c24_62], %107 {strides = array<i32>} : memref<8x32xf32, #tpu.memory_space<vmem>>, vector<8x8xf32>,
    %c0_63 = arith.constant 0 : index
    %c0_64 = arith.constant 0 : index
    %109 = vector.load %arg14[%c0_63, %c0_64] : memref<8x32xf32, #tpu.memory_space<vmem>>, vector<8x32xf32>
    %c0_65 = arith.constant 0 : index
    %c0_66 = arith.constant 0 : index
    %110 = vector.load %arg9[%c0_65, %c0_66] : memref<32x32xf32, #tpu.memory_space<vmem>>, vector<32x32xf32>
    %cst_67 = arith.constant dense<0.000000e+00> : vector<8x32xf32>
    %111 = tpu.matmul %109, %110, %cst_67 {dimension_numbers = #tpu.dot_dimension_numbers<[1], [0], [0], [1], [0, 0, 1, 1], [], []>} : vector<8x32xf32>, vector<32x32xf32>, vector<8x32xf32> -> vector<8x32xf32>
    %112 = arith.addf %28, %111 : vector<8x32xf32>
    %c0_68 = arith.constant 0 : index
    %c0_69 = arith.constant 0 : index
    %c0_70 = arith.constant 0 : index
    %113 = vector.load %arg10[%c0_68, %c0_69, %c0_70] : memref<1x8x32xf32, #tpu.memory_space<vmem>>, vector<1x8x32xf32>
    %114 = vector.shape_cast %113 : vector<1x8x32xf32> to vector<8x32xf32>
    %115 = vector.shape_cast %112 : vector<8x32xf32> to vector<1x8x32xf32>
    tpu.vector_store %arg10[%c0_68, %c0_69, %c0_70], %115 {strides = array<i32>} : memref<1x8x32xf32, #tpu.memory_space<vmem>>, vector<1x8x32xf32>,
    return
  }
  func.func @transform_0(%arg0: i32, %arg1: i32) -> (i32, i32, i32) {
    %c0_i32 = arith.constant 0 : i32
    %c0_i32_0 = arith.constant 0 : i32
    return %arg0, %arg1, %c0_i32 : i32, i32, i32
  }
  func.func @transform_1(%arg0: i32, %arg1: i32) -> (i32, i32, i32) {
    %c0_i32 = arith.constant 0 : i32
    %c0_i32_0 = arith.constant 0 : i32
    %c0_i32_1 = arith.constant 0 : i32
    return %arg0, %c0_i32, %c0_i32_0 : i32, i32, i32
  }
  func.func @transform_2(%arg0: i32, %arg1: i32) -> (i32, i32) {
    %c0_i32 = arith.constant 0 : i32
    %c0_i32_0 = arith.constant 0 : i32
    %c0_i32_1 = arith.constant 0 : i32
    return %c0_i32, %c0_i32_0 : i32, i32
  }
  func.func @transform_3(%arg0: i32, %arg1: i32) -> (i32, i32) {
    %c0_i32 = arith.constant 0 : i32
    %c0_i32_0 = arith.constant 0 : i32
    %c0_i32_1 = arith.constant 0 : i32
    return %c0_i32, %c0_i32_0 : i32, i32
  }
  func.func @transform_4(%arg0: i32, %arg1: i32) -> (i32, i32) {
    %c0_i32 = arith.constant 0 : i32
    %c0_i32_0 = arith.constant 0 : i32
    %c0_i32_1 = arith.constant 0 : i32
    return %c0_i32, %c0_i32_0 : i32, i32
  }
  func.func @transform_5(%arg0: i32, %arg1: i32) -> (i32, i32) {
    %c0_i32 = arith.constant 0 : i32
    %c0_i32_0 = arith.constant 0 : i32
    %c0_i32_1 = arith.constant 0 : i32
    return %c0_i32, %c0_i32_0 : i32, i32
  }
  func.func @transform_6(%arg0: i32, %arg1: i32) -> (i32, i32) {
    %c0_i32 = arith.constant 0 : i32
    %c0_i32_0 = arith.constant 0 : i32
    %c0_i32_1 = arith.constant 0 : i32
    return %c0_i32, %c0_i32_0 : i32, i32
  }
  func.func @transform_7(%arg0: i32, %arg1: i32) -> (i32, i32) {
    %c0_i32 = arith.constant 0 : i32
    %c0_i32_0 = arith.constant 0 : i32
    %c0_i32_1 = arith.constant 0 : i32
    return %c0_i32, %c0_i32_0 : i32, i32
  }
  func.func @transform_8(%arg0: i32, %arg1: i32) -> (i32, i32, i32) {
    %c0_i32 = arith.constant 0 : i32
    %c0_i32_0 = arith.constant 0 : i32
    return %arg0, %arg1, %c0_i32 : i32, i32, i32
  }
}

</mosaic_0001>

<llo_original>
// kernel: tpu_custom_call.1
$region0: #{tpu_custom_call.1}
  #allocation0 [shape = 'u32[]', space=smem, size = 0x4, offset = 0x4, fixed_abs, tag = 'smem constant byte address 0x4 - core index']
  #allocation1 [shape = 'u32[72,128]{1,0:T(1,128)}', space=vmem, size = 0x9000, scoped, tag = 'internal scratch']
  #allocation2 [shape = 'f32[8,32]{1,0:T(8,128)}', space=vmem, size = 0x1000, scoped, tag = 'scratch operand']
  #allocation3 [shape = 'f32[8,32]{1,0:T(8,128)}', space=vmem, size = 0x1000, scoped, tag = 'scratch operand']
  #allocation4 [shape = 'f32[8,32]{1,0:T(8,128)}', space=vmem, size = 0x1000, scoped, tag = 'scratch operand']
  #allocation5 [shape = 'f32[8,32]{1,0:T(8,128)}', space=vmem, size = 0x1000, scoped, tag = 'scratch operand']
  %s0 = inlined_call_operand.hbm [shape: f32[2,8,32], index: 0, kind: input, shape index: {}]
  %s1 = inlined_call_operand.hbm [shape: f32[2,8,32], index: 1, kind: input, shape index: {}]
  %s2 = inlined_call_operand.vmem [shape: f32[1,32], index: 2, kind: input, shape index: {}]
  %s3 = inlined_call_operand.vmem [shape: f32[1,32], index: 3, kind: input, shape index: {}]
  %s4 = inlined_call_operand.hbm [shape: f32[32,32], index: 4, kind: input, shape index: {}]
  %s5 = inlined_call_operand.hbm [shape: f32[32,32], index: 5, kind: input, shape index: {}]
  %s6 = inlined_call_operand.hbm [shape: f32[32,32], index: 6, kind: input, shape index: {}]
  %s7 = inlined_call_operand.hbm [shape: f32[32,32], index: 7, kind: input, shape index: {}]
  %s8 = inlined_call_operand.hbm [shape: f32[2,8,32], index: 8, kind: output, shape index: {}]
  %s9 = sld [smem:[#allocation0]]
  $region93: #{tpu_custom_call.1} parent=0
    _
  %s11 = ssub.s32 1, %s9
  %s12 = scalar_select 0, %s11, %s9
  $region1: #{tpu_custom_call.1} parent=0
    #allocation6 [shape = 'u8[8192]{0}', space=vmem, size = 0x2000, scoped, tag = 'input window, operand 0']
    #allocation7 [shape = 's32[2]{0}', space=sflag, size = 0x8, scoped, tag = 'scoped memory for tpu_custom_call.1']
    #allocation8 [shape = 's32[2]{0}', space=sflag, size = 0x8, scoped, tag = 'scoped memory for tpu_custom_call.1']
    #allocation9 [shape = 'u8[8192]{0}', space=vmem, size = 0x2000, scoped, tag = 'input window, operand 1']
    #allocation10 [shape = 's32[2]{0}', space=sflag, size = 0x8, scoped, tag = 'scoped memory for tpu_custom_call.1']
    #allocation11 [shape = 'u8[16384]{0}', space=vmem, size = 0x4000, scoped, tag = 'input window, operand 4, single buffered']
    #allocation12 [shape = 'u8[16384]{0}', space=vmem, size = 0x4000, scoped, tag = 'input window, operand 5, single buffered']
    #allocation13 [shape = 's32[1]{0}', space=sflag, size = 0x4, scoped, tag = 'scoped memory for tpu_custom_call.1']
    #allocation14 [shape = 'u8[16384]{0}', space=vmem, size = 0x4000, scoped, tag = 'input window, operand 6, single buffered']
    #allocation15 [shape = 'u8[16384]{0}', space=vmem, size = 0x4000, scoped, tag = 'input window, operand 7, single buffered']
    #allocation16 [shape = 's32[1]{0}', space=sflag, size = 0x4, scoped, tag = 'scoped memory for tpu_custom_call.1']
    #allocation17 [shape = 'u8[8192]{0}', space=vmem, size = 0x2000, scoped, tag = 'output window, operand 0']
    %13 = vsyncpa [#allocation7], 0
    %s14 = scalar_lea.sflag [#allocation7], 1
    %15 = vsyncpa %s14, 0
    %16 = vsyncpa [#allocation10], 0
    %s17 = scalar_lea.sflag [#allocation10], 1
    %18 = vsyncpa %s17, 0
    %19 = vsyncpa [#allocation13], 0
    %20 = vsyncpa [#allocation16], 0
    %21 = vsyncpa [#allocation8], 0
    %s22 = scalar_lea.sflag [#allocation8], 1
    %23 = vsyncpa %s22, 0
    loop: start=0, step=1, limit=4
    $region2: #{tpu_custom_call.1} parent=1 // loop_pre_header
      _
    $region3: #{tpu_custom_call.1} parent=1 // loop_header
      %s25 = sphi 0, %s29
      %p26 = scmp.ge.s32.totalorder %s25, 4
      %s32 = sphi 0, %s44
      %s33 = sphi 0, %s40
      %s34 = sphi 0, %s32
      %s35 = sphi 0, %s33
      %s36 = sphi 0, %s34
      %s37 = sphi 0, %s35
      %s49 = sphi 0, %s51
      %s52 = sphi 0, %s49
      %s53 = sphi 0, %s52
      %s69 = sphi 0, %s53
      %s75 = sphi 0, %s77
      %s78 = sphi 0, %s75
      %s79 = sphi 0, %s78
      %s95 = sphi 0, %s79
      %s99 = sphi 0, %s99
      %s101 = sphi 0, %s99
      %s102 = sphi 0, %s101
      %s116 = sphi 0, %s102
      %s120 = sphi 0, %s120
      %s122 = sphi 0, %s120
      %s123 = sphi 0, %s122
      %s137 = sphi 0, %s123
      %s141 = sphi 0, %s141
      %s143 = sphi 0, %s141
      %s144 = sphi 0, %s143
      %s158 = sphi 0, %s144
      %s162 = sphi 0, %s162
      %s164 = sphi 0, %s162
      %s165 = sphi 0, %s164
      %s179 = sphi 0, %s165
      %s183 = sphi 0, %s183
      %s185 = sphi 0, %s183
      %s186 = sphi 0, %s185
      %s200 = sphi 0, %s186
      %s204 = sphi 0, %s204
      %s206 = sphi 0, %s204
      %s207 = sphi 0, %s206
      %s221 = sphi 0, %s207
      %s229 = sphi 0, %s231
      %s232 = sphi 0, %s229
      %s233 = sphi 0, %s232
      %s249 = sphi 0, %s233
    $region4: #{tpu_custom_call.1} parent=1 // loop_header_branch
      %28 = sbr.rel (%p26) target = $region8
    $region5: #{tpu_custom_call.1} parent=1 // loop_body
      %s30 = ssub.s32 %s25, 1
      %s31 = ssub.s32 %s25, 2
      %s38 = sadd.s32 1, %s33
      %p39 = scmp.ge.s32.totalorder %s38, 1
      %s40 = scalar_select %p39, 0, %s38
      %s41 = sadd.s32 1, %s32
      %s42 = scalar_select %p39, %s41, %s32
      %p43 = scmp.ge.s32.totalorder %s42, 2
      %s44 = scalar_select %p43, 0, %s42
      %s45 = ssub.s32 %s32, %s44
      %s46 = ssub.s32 %s33, %s40
      %s47 = sor.u32 %s45, %s46
      %p48 = scmp.eq.s32.totalorder %s47, 0
      %s50 = sadd.s32 %s49, 1
      %s51 = scalar_select %p48, %s49, %s50
      %p54 = pneg %p48
      %p55 = scmp.eq.s32.totalorder %s25, 1
      %p56 = por %p54, %p55
      %p57 = scmp.ne.s32.totalorder %s49, %s52
      %p58 = scmp.eq.s32.totalorder %s25, 0
      %p59 = por %p57, %p58
      %p60 = scmp.ne.s32.totalorder %s49, %s52
      %p61 = scmp.eq.s32.totalorder %s30, 1
      %p62 = por %p60, %p61
      %p63 = scmp.ne.s32.totalorder %s52, %s53
      %p64 = scmp.eq.s32.totalorder %s30, 0
      %p65 = por %p63, %p64
      %p66 = scmp.ne.s32.totalorder %s52, %s53
      %p67 = scmp.eq.s32.totalorder %s31, 1
      %p68 = por %p66, %p67
      %p70 = scmp.ne.s32.totalorder %s53, %s69
      %p71 = scmp.eq.s32.totalorder %s31, 0
      %p72 = por %p70, %p71
      %s73 = ssub.s32 %s32, %s44
      %p74 = scmp.eq.s32.totalorder %s73, 0
      %s76 = sadd.s32 %s75, 1
      %s77 = scalar_select %p74, %s75, %s76
      %p80 = pneg %p74
      %p81 = scmp.eq.s32.totalorder %s25, 1
      %p82 = por %p80, %p81
      %p83 = scmp.ne.s32.totalorder %s75, %s78
      %p84 = scmp.eq.s32.totalorder %s25, 0
      %p85 = por %p83, %p84
      %p86 = scmp.ne.s32.totalorder %s75, %s78
      %p87 = scmp.eq.s32.totalorder %s30, 1
      %p88 = por %p86, %p87
      %p89 = scmp.ne.s32.totalorder %s78, %s79
      %p90 = scmp.eq.s32.totalorder %s30, 0
      %p91 = por %p89, %p90
      %p92 = scmp.ne.s32.totalorder %s78, %s79
      %p93 = scmp.eq.s32.totalorder %s31, 1
      %p94 = por %p92, %p93
      %p96 = scmp.ne.s32.totalorder %s79, %s95
      %p97 = scmp.eq.s32.totalorder %s31, 0
      %p98 = por %p96, %p97
      %s100 = sadd.s32 %s99, 1
      %p103 = scmp.eq.s32.totalorder %s25, 1
      %p104 = scmp.ne.s32.totalorder %s99, %s101
      %p105 = scmp.eq.s32.totalorder %s25, 0
      %p106 = por %p104, %p105
      %p107 = scmp.ne.s32.totalorder %s99, %s101
      %p108 = scmp.eq.s32.totalorder %s30, 1
      %p109 = por %p107, %p108
      %p110 = scmp.ne.s32.totalorder %s101, %s102
      %p111 = scmp.eq.s32.totalorder %s30, 0
      %p112 = por %p110, %p111
      %p113 = scmp.ne.s32.totalorder %s101, %s102
      %p114 = scmp.eq.s32.totalorder %s31, 1
      %p115 = por %p113, %p114
      %p117 = scmp.ne.s32.totalorder %s102, %s116
      %p118 = scmp.eq.s32.totalorder %s31, 0
      %p119 = por %p117, %p118
      %s121 = sadd.s32 %s120, 1
      %p124 = scmp.eq.s32.totalorder %s25, 1
      %p125 = scmp.ne.s32.totalorder %s120, %s122
      %p126 = scmp.eq.s32.totalorder %s25, 0
      %p127 = por %p125, %p126
      %p128 = scmp.ne.s32.totalorder %s120, %s122
      %p129 = scmp.eq.s32.totalorder %s30, 1
      %p130 = por %p128, %p129
      %p131 = scmp.ne.s32.totalorder %s122, %s123
      %p132 = scmp.eq.s32.totalorder %s30, 0
      %p133 = por %p131, %p132
      %p134 = scmp.ne.s32.totalorder %s122, %s123
      %p135 = scmp.eq.s32.totalorder %s31, 1
      %p136 = por %p134, %p135
      %p138 = scmp.ne.s32.totalorder %s123, %s137
      %p139 = scmp.eq.s32.totalorder %s31, 0
      %p140 = por %p138, %p139
      %s142 = sadd.s32 %s141, 1
      %p145 = scmp.eq.s32.totalorder %s25, 1
      %p146 = scmp.ne.s32.totalorder %s141, %s143
      %p147 = scmp.eq.s32.totalorder %s25, 0
      %p148 = por %p146, %p147
      %p149 = scmp.ne.s32.totalorder %s141, %s143
      %p150 = scmp.eq.s32.totalorder %s30, 1
      %p151 = por %p149, %p150
      %p152 = scmp.ne.s32.totalorder %s143, %s144
      %p153 = scmp.eq.s32.totalorder %s30, 0
      %p154 = por %p152, %p153
      %p155 = scmp.ne.s32.totalorder %s143, %s144
      %p156 = scmp.eq.s32.totalorder %s31, 1
      %p157 = por %p155, %p156
      %p159 = scmp.ne.s32.totalorder %s144, %s158
      %p160 = scmp.eq.s32.totalorder %s31, 0
      %p161 = por %p159, %p160
      %s163 = sadd.s32 %s162, 1
      %p166 = scmp.eq.s32.totalorder %s25, 1
      %p167 = scmp.ne.s32.totalorder %s162, %s164
      %p168 = scmp.eq.s32.totalorder %s25, 0
      %p169 = por %p167, %p168
      %p170 = scmp.ne.s32.totalorder %s162, %s164
      %p171 = scmp.eq.s32.totalorder %s30, 1
      %p172 = por %p170, %p171
      %p173 = scmp.ne.s32.totalorder %s164, %s165
      %p174 = scmp.eq.s32.totalorder %s30, 0
      %p175 = por %p173, %p174
      %p176 = scmp.ne.s32.totalorder %s164, %s165
      %p177 = scmp.eq.s32.totalorder %s31, 1
      %p178 = por %p176, %p177
      %p180 = scmp.ne.s32.totalorder %s165, %s179
      %p181 = scmp.eq.s32.totalorder %s31, 0
      %p182 = por %p180, %p181
      %s184 = sadd.s32 %s183, 1
      %p187 = scmp.eq.s32.totalorder %s25, 1
      %p188 = scmp.ne.s32.totalorder %s183, %s185
      %p189 = scmp.eq.s32.totalorder %s25, 0
      %p190 = por %p188, %p189
      %p191 = scmp.ne.s32.totalorder %s183, %s185
      %p192 = scmp.eq.s32.totalorder %s30, 1
      %p193 = por %p191, %p192
      %p194 = scmp.ne.s32.totalorder %s185, %s186
      %p195 = scmp.eq.s32.totalorder %s30, 0
      %p196 = por %p194, %p195
      %p197 = scmp.ne.s32.totalorder %s185, %s186
      %p198 = scmp.eq.s32.totalorder %s31, 1
      %p199 = por %p197, %p198
      %p201 = scmp.ne.s32.totalorder %s186, %s200
      %p202 = scmp.eq.s32.totalorder %s31, 0
      %p203 = por %p201, %p202
      %s205 = sadd.s32 %s204, 1
      %p208 = scmp.eq.s32.totalorder %s25, 1
      %p209 = scmp.ne.s32.totalorder %s204, %s206
      %p210 = scmp.eq.s32.totalorder %s25, 0
      %p211 = por %p209, %p210
      %p212 = scmp.ne.s32.totalorder %s204, %s206
      %p213 = scmp.eq.s32.totalorder %s30, 1
      %p214 = por %p212, %p213
      %p215 = scmp.ne.s32.totalorder %s206, %s207
      %p216 = scmp.eq.s32.totalorder %s30, 0
      %p217 = por %p215, %p216
      %p218 = scmp.ne.s32.totalorder %s206, %s207
      %p219 = scmp.eq.s32.totalorder %s31, 1
      %p220 = por %p218, %p219
      %p222 = scmp.ne.s32.totalorder %s207, %s221
      %p223 = scmp.eq.s32.totalorder %s31, 0
      %p224 = por %p222, %p223
      %s225 = ssub.s32 %s32, %s44
      %s226 = ssub.s32 %s33, %s40
      %s227 = sor.u32 %s225, %s226
      %p228 = scmp.eq.s32.totalorder %s227, 0
      %s230 = sadd.s32 %s229, 1
      %s231 = scalar_select %p228, %s229, %s230
      %p234 = pneg %p228
      %p235 = scmp.eq.s32.totalorder %s25, 1
      %p236 = por %p234, %p235
      %p237 = scmp.ne.s32.totalorder %s229, %s232
      %p238 = scmp.eq.s32.totalorder %s25, 0
      %p239 = por %p237, %p238
      %p240 = scmp.ne.s32.totalorder %s229, %s232
      %p241 = scmp.eq.s32.totalorder %s30, 1
      %p242 = por %p240, %p241
      %p243 = scmp.ne.s32.totalorder %s232, %s233
      %p244 = scmp.eq.s32.totalorder %s30, 0
      %p245 = por %p243, %p244
      %p246 = scmp.ne.s32.totalorder %s232, %s233
      %p247 = scmp.eq.s32.totalorder %s31, 1
      %p248 = por %p246, %p247
      %p250 = scmp.ne.s32.totalorder %s233, %s249
      %p251 = scmp.eq.s32.totalorder %s31, 0
      %p252 = por %p250, %p251
      %p253 = scmp.le.s32.totalorder 1, %s25
      %p254 = scmp.lt.s32.totalorder %s25, 3
      %p255 = pnand %p253, %p254
      %p256 = pneg %p255
      // Predicated region
      $region9: #{tpu_custom_call.1} parent=5 // pred_check
        _
      $region10: #{tpu_custom_call.1} parent=5 // pred_check_branch
        %258 = sbr.rel (%p255) target = $region12
      $region11: #{tpu_custom_call.1} parent=5 // pred_region
        %s259 = ssub.s32 %s25, 1
        // Predicated region
        $region13: #{tpu_custom_call.1} parent=11 // pred_check
          %p260 = pneg %p112
        $region14: #{tpu_custom_call.1} parent=11 // pred_check_branch
          %262 = sbr.rel (%p260) target = $region16
        $region15: #{tpu_custom_call.1} parent=11 // pred_region
          _
        $region16: #{tpu_custom_call.1} parent=11 // pred_fallthru
          _
        // Predicated region
        $region17: #{tpu_custom_call.1} parent=11 // pred_check
          %p263 = pneg %p133
        $region18: #{tpu_custom_call.1} parent=11 // pred_check_branch
          %265 = sbr.rel (%p263) target = $region20
        $region19: #{tpu_custom_call.1} parent=11 // pred_region
          _
        $region20: #{tpu_custom_call.1} parent=11 // pred_fallthru
          _
        // Predicated region
        $region21: #{tpu_custom_call.1} parent=11 // pred_check
          %p266 = pneg %p154
        $region22: #{tpu_custom_call.1} parent=11 // pred_check_branch
          %268 = sbr.rel (%p266) target = $region24
        $region23: #{tpu_custom_call.1} parent=11 // pred_region
          %270 = vsyncadd [#allocation10], 0
          %s271 = sshll.u32 %s4, 4
          %s272 = int_to_ptr.hbm [resolvable:$true] %s271
          %s273 = sshll.u32 [#allocation11], 4
          %s274 = int_to_ptr.vmem [resolvable:$true] %s273
          %279 = dma.hbm_to_vmem [thread:$0]  %s272, 512, %s274, [#allocation10], 128, 128, 8
        $region24: #{tpu_custom_call.1} parent=11 // pred_fallthru
          _
        // Predicated region
        $region25: #{tpu_custom_call.1} parent=11 // pred_check
          %p280 = pneg %p175
        $region26: #{tpu_custom_call.1} parent=11 // pred_check_branch
          %282 = sbr.rel (%p280) target = $region28
        $region27: #{tpu_custom_call.1} parent=11 // pred_region
          %284 = vsyncadd [#allocation13], 0
          %s285 = sshll.u32 %s5, 4
          %s286 = int_to_ptr.hbm [resolvable:$true] %s285
          %s287 = sshll.u32 [#allocation12], 4
          %s288 = int_to_ptr.vmem [resolvable:$true] %s287
          %293 = dma.hbm_to_vmem [thread:$0]  %s286, 512, %s288, [#allocation13], 128, 128, 8
        $region28: #{tpu_custom_call.1} parent=11 // pred_fallthru
          _
        // Predicated region
        $region29: #{tpu_custom_call.1} parent=11 // pred_check
          %p294 = pneg %p196
        $region30: #{tpu_custom_call.1} parent=11 // pred_check_branch
          %296 = sbr.rel (%p294) target = $region32
        $region31: #{tpu_custom_call.1} parent=11 // pred_region
          %298 = vsyncadd [#allocation13], 0
          %s299 = sshll.u32 %s6, 4
          %s300 = int_to_ptr.hbm [resolvable:$true] %s299
          %s301 = sshll.u32 [#allocation14], 4
          %s302 = int_to_ptr.vmem [resolvable:$true] %s301
          %307 = dma.hbm_to_vmem [thread:$0]  %s300, 512, %s302, [#allocation13], 128, 128, 8
        $region32: #{tpu_custom_call.1} parent=11 // pred_fallthru
          _
        // Predicated region
        $region33: #{tpu_custom_call.1} parent=11 // pred_check
          %p308 = pneg %p217
        $region34: #{tpu_custom_call.1} parent=11 // pred_check_branch
          %310 = sbr.rel (%p308) target = $region36
        $region35: #{tpu_custom_call.1} parent=11 // pred_region
          %312 = vsyncadd [#allocation16], 0
          %s313 = sshll.u32 %s7, 4
          %s314 = int_to_ptr.hbm [resolvable:$true] %s313
          %s315 = sshll.u32 [#allocation15], 4
          %s316 = int_to_ptr.vmem [resolvable:$true] %s315
          %321 = dma.hbm_to_vmem [thread:$0]  %s314, 512, %s316, [#allocation16], 128, 128, 8
        $region36: #{tpu_custom_call.1} parent=11 // pred_fallthru
          _
      $region12: #{tpu_custom_call.1} parent=5 // pred_fallthru
        _
      %p322 = scmp.lt.s32.totalorder %s25, 2
      // Predicated region
      $region37: #{tpu_custom_call.1} parent=5 // pred_check
        %p323 = pneg %p322
      $region38: #{tpu_custom_call.1} parent=5 // pred_check_branch
        %325 = sbr.rel (%p323) target = $region40
      $region39: #{tpu_custom_call.1} parent=5 // pred_region
        // Predicated region
        $region41: #{tpu_custom_call.1} parent=39 // pred_check
          %p326 = pneg %p59
        $region42: #{tpu_custom_call.1} parent=39 // pred_check_branch
          %328 = sbr.rel (%p326) target = $region44
        $region43: #{tpu_custom_call.1} parent=39 // pred_region
          %s329 = sand.u32 %s49, 1
          %s330 = scalar_lea.sflag [#allocation7], %s329
          %s331 = sand.u32 %s49, 1
          %s332 = smul.addr %s331, 8
          %s333 = scalar_lea.vmem [#allocation6], %s332
          %335 = vsyncadd %s330, 0
          %s336 = sadd.s32 %s33, %s32
          %s337 = smul.addr %s336, 8
          %s338 = scalar_lea.hbm %s0, %s337
          %s340 = sshll.u32 %s338, 4
          %s341 = int_to_ptr.hbm [resolvable:$true] %s340
          %s342 = sshll.u32 %s333, 4
          %s343 = int_to_ptr.vmem [resolvable:$true] %s342
          %345 = dma.hbm_to_vmem [thread:$0]  %s341, 128, %s343, %s330
        $region44: #{tpu_custom_call.1} parent=39 // pred_fallthru
          _
        // Predicated region
        $region45: #{tpu_custom_call.1} parent=39 // pred_check
          %p346 = pneg %p85
        $region46: #{tpu_custom_call.1} parent=39 // pred_check_branch
          %348 = sbr.rel (%p346) target = $region48
        $region47: #{tpu_custom_call.1} parent=39 // pred_region
          %s349 = sand.u32 %s25, 1
          %s350 = scalar_lea.sflag [#allocation10], %s349
          %s351 = sand.u32 %s75, 1
          %s352 = smul.addr %s351, 8
          %s353 = scalar_lea.vmem [#allocation9], %s352
          %355 = vsyncadd %s350, 0
          %s356 = smul.addr %s32, 8
          %s357 = scalar_lea.hbm %s1, %s356
          %s359 = sshll.u32 %s357, 4
          %s360 = int_to_ptr.hbm [resolvable:$true] %s359
          %s361 = sshll.u32 %s353, 4
          %s362 = int_to_ptr.vmem [resolvable:$true] %s361
          %364 = dma.hbm_to_vmem [thread:$0]  %s360, 128, %s362, %s350
        $region48: #{tpu_custom_call.1} parent=39 // pred_fallthru
          _
      $region40: #{tpu_custom_call.1} parent=5 // pred_fallthru
        _
      %p365 = scmp.le.s32.totalorder 1, %s25
      %p366 = scmp.lt.s32.totalorder %s25, 3
      %p367 = pnand %p365, %p366
      %p368 = pneg %p367
      // Predicated region
      $region49: #{tpu_custom_call.1} parent=5 // pred_check
        _
      $region50: #{tpu_custom_call.1} parent=5 // pred_check_branch
        %370 = sbr.rel (%p367) target = $region52
      $region51: #{tpu_custom_call.1} parent=5 // pred_region
        %s371 = ssub.s32 %s25, 1
        %s372 = sand.u32 %s52, 1
        %s373 = scalar_lea.sflag [#allocation7], %s372
        %s374 = sand.u32 %s52, 1
        %s375 = smul.addr %s374, 8
        %s376 = scalar_lea.vmem [#allocation6], %s375
        // Predicated region
        $region53: #{tpu_custom_call.1} parent=51 // pred_check
          %p377 = pneg %p65
        $region54: #{tpu_custom_call.1} parent=51 // pred_check_branch
          %379 = sbr.rel (%p377) target = $region56
        $region55: #{tpu_custom_call.1} parent=51 // pred_region
          %381 = dma.done %s373, 128
        $region56: #{tpu_custom_call.1} parent=51 // pred_fallthru
          _
        %s382 = sand.u32 %s30, 1
        %s383 = scalar_lea.sflag [#allocation10], %s382
        %s384 = sand.u32 %s78, 1
        %s385 = smul.addr %s384, 8
        %s386 = scalar_lea.vmem [#allocation9], %s385
        // Predicated region
        $region57: #{tpu_custom_call.1} parent=51 // pred_check
          %p387 = pneg %p91
        $region58: #{tpu_custom_call.1} parent=51 // pred_check_branch
          %389 = sbr.rel (%p387) target = $region60
        $region59: #{tpu_custom_call.1} parent=51 // pred_region
          %391 = dma.done %s383, 128
        $region60: #{tpu_custom_call.1} parent=51 // pred_fallthru
          _
        // Predicated region
        $region61: #{tpu_custom_call.1} parent=51 // pred_check
          %p392 = pneg %p154
        $region62: #{tpu_custom_call.1} parent=51 // pred_check_branch
          %394 = sbr.rel (%p392) target = $region64
        $region63: #{tpu_custom_call.1} parent=51 // pred_region
          %396 = dma.done [#allocation10], 512
        $region64: #{tpu_custom_call.1} parent=51 // pred_fallthru
          _
        // Predicated region
        $region65: #{tpu_custom_call.1} parent=51 // pred_check
          %p397 = pneg %p175
        $region66: #{tpu_custom_call.1} parent=51 // pred_check_branch
          %399 = sbr.rel (%p397) target = $region68
        $region67: #{tpu_custom_call.1} parent=51 // pred_region
          %401 = dma.done [#allocation13], 512
        $region68: #{tpu_custom_call.1} parent=51 // pred_fallthru
          _
        // Predicated region
        $region69: #{tpu_custom_call.1} parent=51 // pred_check
          %p402 = pneg %p196
        $region70: #{tpu_custom_call.1} parent=51 // pred_check_branch
          %404 = sbr.rel (%p402) target = $region72
        $region71: #{tpu_custom_call.1} parent=51 // pred_region
          %406 = dma.done [#allocation13], 512
        $region72: #{tpu_custom_call.1} parent=51 // pred_fallthru
          _
        // Predicated region
        $region73: #{tpu_custom_call.1} parent=51 // pred_check
          %p407 = pneg %p217
        $region74: #{tpu_custom_call.1} parent=51 // pred_check_branch
          %409 = sbr.rel (%p407) target = $region76
        $region75: #{tpu_custom_call.1} parent=51 // pred_region
          %411 = dma.done [#allocation16], 512
        $region76: #{tpu_custom_call.1} parent=51 // pred_fallthru
          _
        %s412 = sand.u32 %s52, 1
        %s413 = scalar_lea.sflag [#allocation7], %s412
        %s414 = sand.u32 %s52, 1
        %s415 = smul.addr %s414, 8
        %s416 = scalar_lea.vmem [#allocation6], %s415
        %p417 = pneg %p65
        %p418 = pneg %p62
        %s419 = sand.u32 %s30, 1
        %s420 = scalar_lea.sflag [#allocation10], %s419
        %s421 = sand.u32 %s78, 1
        %s422 = smul.addr %s421, 8
        %s423 = scalar_lea.vmem [#allocation9], %s422
        %p424 = pneg %p91
        %p425 = pneg %p88
        %p426 = pneg %p112
        %p427 = pneg %p109
        %p428 = pneg %p133
        %p429 = pneg %p130
        %p430 = pneg %p154
        %p431 = pneg %p151
        %p432 = pneg %p175
        %p433 = pneg %p172
        %p434 = pneg %p196
        %p435 = pneg %p193
        %p436 = pneg %p217
        %p437 = pneg %p214
        %p438 = pneg %p245
        %p439 = pneg %p242
        %s440 = sand.u32 %s232, 1
        %s441 = scalar_lea.sflag [#allocation8], %s440
        %s442 = sand.u32 %s232, 1
        %s443 = smul.addr %s442, 8
        %s444 = scalar_lea.vmem [#allocation17], %s443
        %v445 = vld [vmem:[%s2] sm:$0x1]
        %v446 = vld [vmem:[%s3] sm:$0x1]
        %p447 = scmp.eq.s32.totalorder %s35, 0
        // Predicated region
        $region77: #{tpu_custom_call.1} parent=51 // pred_check
          %p448 = pneg %p447
        $region78: #{tpu_custom_call.1} parent=51 // pred_check_branch
          %450 = sbr.rel (%p448) target = $region80
        $region79: #{tpu_custom_call.1} parent=51 // pred_region
          %v451 = vld [vmem:[%s386] sm:$0xff]
          %vm452 = vcmask 261120
          %v453 = vsel %vm452, %v451, 0.0
          %454 = vadd.xlane.f32.xlu0 %v453
          %v455 = vpop.xlane.xlu0 %454
          %v456 = vrcp.pop 32.0
          %v457 = vmul.f32 32.0, %v456
          %v458 = vsub.f32 1.0, %v457
          %v459 = vmul.f32 %v456, %v458
          %v460 = vadd.f32 %v456, %v459
          %vm461 = vweird.f32 %v456
          %v462 = vsel %vm461, %v456, %v460
          %v463 = vmul.f32 %v455, %v462
          %v464 = vsub.f32 %v451, %v463
          %v465 = vmul.f32 %v464, %v464
          %v466 = vsel %vm452, %v465, 0.0
          %467 = vadd.xlane.f32.xlu0 %v466
          %v468 = vpop.xlane.xlu0 %467
          %v469 = vmul.f32 %v468, %v462
          %v470 = vadd.f32 %v469, 1e-05
          %v471 = vrsqrt.pop %v470
          %v472 = vmul.f32 %v471, %v470
          %v473 = vmul.f32 %v472, %v471
          %v474 = vmul.f32 0.5, %v473
          %v475 = vsub.f32 1.5, %v474
          %v476 = vmul.f32 %v471, %v475
          %vm477 = vweird.f32 %v470
          %vm478 = vweird.f32 %v471
          %vm479 = vmor %vm477, %vm478
          %v480 = vsel %vm479, %v471, %v476
          %v481 = vmul.f32 %v464, %v480
          %v483 = vperm.slane %v445, 0
          %v485 = vmul.f32 %v481, %v483
          %v487 = vperm.slane %v446, 0
          %v489 = vadd.f32 %v485, %v487
          %v490 = vld [vmem:[#allocation12] sm:$0xff]
          %v491 = vld [vmem:[#allocation12 + $0x8] sm:$0xff]
          %v492 = vld [vmem:[#allocation12 + $0x10] sm:$0xff]
          %v493 = vld [vmem:[#allocation12 + $0x18] sm:$0xff]
          %v495 = vsel %vm452, %v489, 0
          %497 = vmatpush.msra.mxu0 0.0
          %498 = vmatpush.msra.mxu0 0.0
          %499 = vmatpush.msra.mxu0 0.0
          %500 = vmatpush.msra.mxu0 0.0
          %501 = vmatpush.msra.mxu0 0.0
          %502 = vmatpush.msra.mxu0 0.0
          %503 = vmatpush.msra.mxu0 0.0
          %504 = vmatpush.msra.mxu0 0.0
          %505 = vmatpush.msra.mxu0 0.0
          %506 = vmatpush.msra.mxu0 0.0
          %507 = vmatpush.msra.mxu0 0.0
          %508 = vmatpush.msra.mxu0 0.0
          %509 = vmatpush.msra.mxu0 %v493
          %510 = vmatpush.msra.mxu0 %v492
          %511 = vmatpush.msra.mxu0 %v491
          %512 = vmatpush.msra.mxu0 %v490
          %513 = vmatmul.f32.gmra.mxu0 %v495
          %v514 = vpop.f32.mrf.mxu0
          %v515 = vadd.f32 0.0, %v514
          %516 = vdwg.mxu0
          %517 = vst.msk [vmem:[#allocation3] sm:$0xff] %vm452, %v515
          %v518 = vld [vmem:[#allocation14] sm:$0xff]
          %v519 = vld [vmem:[#allocation14 + $0x8] sm:$0xff]
          %v520 = vld [vmem:[#allocation14 + $0x10] sm:$0xff]
          %v521 = vld [vmem:[#allocation14 + $0x18] sm:$0xff]
          %522 = vmatpush.msra.mxu0 0.0
          %523 = vmatpush.msra.mxu0 0.0
          %524 = vmatpush.msra.mxu0 0.0
          %525 = vmatpush.msra.mxu0 0.0
          %526 = vmatpush.msra.mxu0 0.0
          %527 = vmatpush.msra.mxu0 0.0
          %528 = vmatpush.msra.mxu0 0.0
          %529 = vmatpush.msra.mxu0 0.0
          %530 = vmatpush.msra.mxu0 0.0
          %531 = vmatpush.msra.mxu0 0.0
          %532 = vmatpush.msra.mxu0 0.0
          %533 = vmatpush.msra.mxu0 0.0
          %534 = vmatpush.msra.mxu0 %v521
          %535 = vmatpush.msra.mxu0 %v520
          %536 = vmatpush.msra.mxu0 %v519
          %537 = vmatpush.msra.mxu0 %v518
          %538 = vmatmul.f32.gmra.mxu0 %v495
          %v539 = vpop.f32.mrf.mxu0
          %v540 = vadd.f32 0.0, %v539
          %541 = vdwg.mxu0
          %542 = vst.msk [vmem:[#allocation4] sm:$0xff] %vm452, %v540
        $region80: #{tpu_custom_call.1} parent=51 // pred_fallthru
          _
        %v543 = vld [vmem:[%s376] sm:$0xff]
        %vm544 = vcmask 261120
        %v545 = vsel %vm544, %v543, 0.0
        %546 = vadd.xlane.f32.xlu0 %v545
        %v547 = vpop.xlane.xlu0 %546
        %v548 = vrcp.pop 32.0
        %v549 = vmul.f32 32.0, %v548
        %v550 = vsub.f32 1.0, %v549
        %v551 = vmul.f32 %v548, %v550
        %v552 = vadd.f32 %v548, %v551
        %vm553 = vweird.f32 %v548
        %v554 = vsel %vm553, %v548, %v552
        %v555 = vmul.f32 %v547, %v554
        %v556 = vsub.f32 %v543, %v555
        %v557 = vmul.f32 %v556, %v556
        %v558 = vsel %vm544, %v557, 0.0
        %559 = vadd.xlane.f32.xlu0 %v558
        %v560 = vpop.xlane.xlu0 %559
        %v561 = vmul.f32 %v560, %v554
        %v562 = vadd.f32 %v561, 1e-05
        %v563 = vrsqrt.pop %v562
        %v564 = vmul.f32 %v563, %v562
        %v565 = vmul.f32 %v564, %v563
        %v566 = vmul.f32 0.5, %v565
        %v567 = vsub.f32 1.5, %v566
        %v568 = vmul.f32 %v563, %v567
        %vm569 = vweird.f32 %v562
        %vm570 = vweird.f32 %v563
        %vm571 = vmor %vm569, %vm570
        %v572 = vsel %vm571, %v563, %v568
        %v573 = vmul.f32 %v556, %v572
        %v575 = vperm.slane %v445, 0
        %v577 = vmul.f32 %v573, %v575
        %v579 = vperm.slane %v446, 0
        %v581 = vadd.f32 %v577, %v579
        %v582 = vld [vmem:[#allocation11] sm:$0xff]
        %v583 = vld [vmem:[#allocation11 + $0x8] sm:$0xff]
        %v584 = vld [vmem:[#allocation11 + $0x10] sm:$0xff]
        %v585 = vld [vmem:[#allocation11 + $0x18] sm:$0xff]
        %v587 = vsel %vm544, %v581, 0
        %589 = vmatpush.msra.mxu0 0.0
        %590 = vmatpush.msra.mxu0 0.0
        %591 = vmatpush.msra.mxu0 0.0
        %592 = vmatpush.msra.mxu0 0.0
        %593 = vmatpush.msra.mxu0 0.0
        %594 = vmatpush.msra.mxu0 0.0
        %595 = vmatpush.msra.mxu0 0.0
        %596 = vmatpush.msra.mxu0 0.0
        %597 = vmatpush.msra.mxu0 0.0
        %598 = vmatpush.msra.mxu0 0.0
        %599 = vmatpush.msra.mxu0 0.0
        %600 = vmatpush.msra.mxu0 0.0
        %601 = vmatpush.msra.mxu0 %v585
        %602 = vmatpush.msra.mxu0 %v584
        %603 = vmatpush.msra.mxu0 %v583
        %604 = vmatpush.msra.mxu0 %v582
        %605 = vmatmul.f32.gmra.mxu0 %v587
        %v606 = vpop.f32.mrf.mxu0
        %v607 = vadd.f32 0.0, %v606
        %608 = vdwg.mxu0
        %609 = vst.msk [vmem:[#allocation2] sm:$0xff] %vm544, %v607
        %v610 = vlaneseq
        %v611 = vshrl.u32 %v610, 7
        %s612 = smul.u32 %s35, 8
        %v613 = vstv %s612
        %v614 = vadd.s32 %v611, %v613
        %v615 = vlaneseq
        %v616 = vand.u32 %v615, 127
        %vm617 = vcmp.gt.s32.totalorder %v616, %v614
        %v618 = vsel %vm617, -1e+09, 0.0
        %v619 = vld [vmem:[#allocation2] sm:$0xff]
        %v620 = vld [vmem:[#allocation3] sm:$0xff]
        %v621 = vld [vmem:[#allocation4] sm:$0xff]
        %vm622 = vcmask 64512
        %v624 = vsel %vm622, %v619, 0
        %v627 = vsel %vm622, %v620, 0
        %629 = vmatpush.xpose.msra.mxu0 0.0
        %630 = vmatpush.xpose.msra.mxu0 0.0
        %631 = vmatpush.xpose.msra.mxu0 0.0
        %632 = vmatpush.xpose.msra.mxu0 0.0
        %633 = vmatpush.xpose.msra.mxu0 0.0
        %634 = vmatpush.xpose.msra.mxu0 0.0
        %635 = vmatpush.xpose.msra.mxu0 0.0
        %636 = vmatpush.xpose.msra.mxu0 0.0
        %637 = vmatpush.xpose.msra.mxu0 0.0
        %638 = vmatpush.xpose.msra.mxu0 0.0
        %639 = vmatpush.xpose.msra.mxu0 0.0
        %640 = vmatpush.xpose.msra.mxu0 0.0
        %641 = vmatpush.xpose.msra.mxu0 0.0
        %642 = vmatpush.xpose.msra.mxu0 0.0
        %643 = vmatpush.xpose.msra.mxu0 0.0
        %644 = vmatpush.xpose.msra.mxu0 %v627
        %645 = vmatmul.f32.gmra.mxu0 %v624
        %v646 = vpop.f32.mrf.mxu0
        %v647 = vadd.f32 %v618, %v646
        %648 = vdwg.mxu0
        %v649 = vsel %vm622, %v647, -inf
        %650 = vmax.xlane.f32.xlu0 %v649
        %v651 = vpop.xlane.xlu0 %650
        %v652 = vsub.f32 %v647, %v651
        %v653 = vmul.f32 %v652, 1.442695
        %v654 = vpow.pop %v653
        %v655 = vsel %vm622, %v654, 0.0
        %656 = vadd.xlane.f32.xlu0 %v655
        %v657 = vpop.xlane.xlu0 %656
        %v658 = vrcp.pop %v657
        %v659 = vmul.f32 %v654, %v658
        %v661 = vsel %vm622, %v659, 0
        %663 = vmatpush.msra.mxu0 0.0
        %664 = vmatpush.msra.mxu0 0.0
        %665 = vmatpush.msra.mxu0 0.0
        %666 = vmatpush.msra.mxu0 0.0
        %667 = vmatpush.msra.mxu0 0.0
        %668 = vmatpush.msra.mxu0 0.0
        %669 = vmatpush.msra.mxu0 0.0
        %670 = vmatpush.msra.mxu0 0.0
        %671 = vmatpush.msra.mxu0 0.0
        %672 = vmatpush.msra.mxu0 0.0
        %673 = vmatpush.msra.mxu0 0.0
        %674 = vmatpush.msra.mxu0 0.0
        %675 = vmatpush.msra.mxu0 0.0
        %676 = vmatpush.msra.mxu0 0.0
        %677 = vmatpush.msra.mxu0 0.0
        %678 = vmatpush.msra.mxu0 %v621
        %679 = vmatmul.f32.gmra.mxu0 %v661
        %v680 = vpop.f32.mrf.mxu0
        %v681 = vadd.f32 0.0, %v680
        %682 = vdwg.mxu0
        %683 = vst.msk [vmem:[#allocation5] sm:$0xff] %vm622, %v681
        %v684 = vld [vmem:[#allocation2] sm:$0xff]
        %v685 = vld [vmem:[#allocation3] sm:$0xff]
        %v686 = vld [vmem:[#allocation4] sm:$0xff]
        %688 = vrot.lane.b32.xlu0 %v684, 120
        %v689 = vpop.permute.xlu0 %688
        %691 = vrot.lane.b32.xlu0 %v685, 120
        %v692 = vpop.permute.xlu0 %691
        %v693 = vsel %vm622, %v689, 0
        %v695 = vsel %vm622, %v692, 0
        %697 = vmatpush.xpose.msra.mxu0 0.0
        %698 = vmatpush.xpose.msra.mxu0 0.0
        %699 = vmatpush.xpose.msra.mxu0 0.0
        %700 = vmatpush.xpose.msra.mxu0 0.0
        %701 = vmatpush.xpose.msra.mxu0 0.0
        %702 = vmatpush.xpose.msra.mxu0 0.0
        %703 = vmatpush.xpose.msra.mxu0 0.0
        %704 = vmatpush.xpose.msra.mxu0 0.0
        %705 = vmatpush.xpose.msra.mxu0 0.0
        %706 = vmatpush.xpose.msra.mxu0 0.0
        %707 = vmatpush.xpose.msra.mxu0 0.0
        %708 = vmatpush.xpose.msra.mxu0 0.0
        %709 = vmatpush.xpose.msra.mxu0 0.0
        %710 = vmatpush.xpose.msra.mxu0 0.0
        %711 = vmatpush.xpose.msra.mxu0 0.0
        %712 = vmatpush.xpose.msra.mxu0 %v695
        %713 = vmatmul.f32.gmra.mxu0 %v693
        %v714 = vpop.f32.mrf.mxu0
        %v715 = vadd.f32 %v618, %v714
        %716 = vdwg.mxu0
        %v717 = vsel %vm622, %v715, -inf
        %718 = vmax.xlane.f32.xlu0 %v717
        %v719 = vpop.xlane.xlu0 %718
        %v720 = vsub.f32 %v715, %v719
        %v721 = vmul.f32 %v720, 1.442695
        %v722 = vpow.pop %v721
        %v723 = vsel %vm622, %v722, 0.0
        %724 = vadd.xlane.f32.xlu0 %v723
        %v725 = vpop.xlane.xlu0 %724
        %v726 = vrcp.pop %v725
        %v727 = vmul.f32 %v722, %v726
        %729 = vrot.lane.b32.xlu0 %v686, 120
        %v730 = vpop.permute.xlu0 %729
        %v733 = vsel %vm622, %v727, 0
        %735 = vmatpush.msra.mxu0 0.0
        %736 = vmatpush.msra.mxu0 0.0
        %737 = vmatpush.msra.mxu0 0.0
        %738 = vmatpush.msra.mxu0 0.0
        %739 = vmatpush.msra.mxu0 0.0
        %740 = vmatpush.msra.mxu0 0.0
        %741 = vmatpush.msra.mxu0 0.0
        %742 = vmatpush.msra.mxu0 0.0
        %743 = vmatpush.msra.mxu0 0.0
        %744 = vmatpush.msra.mxu0 0.0
        %745 = vmatpush.msra.mxu0 0.0
        %746 = vmatpush.msra.mxu0 0.0
        %747 = vmatpush.msra.mxu0 0.0
        %748 = vmatpush.msra.mxu0 0.0
        %749 = vmatpush.msra.mxu0 0.0
        %750 = vmatpush.msra.mxu0 %v730
        %751 = vmatmul.f32.gmra.mxu0 %v733
        %v752 = vpop.f32.mrf.mxu0
        %v753 = vadd.f32 0.0, %v752
        %754 = vdwg.mxu0
        %756 = vrot.lane.b32.xlu0 %v753, 8
        %v757 = vpop.permute.xlu0 %756
        %vm759 = vcmask 130112
        %760 = vst.msk [vmem:[#allocation5] sm:$0xff] %vm759, %v757
        %v761 = vld [vmem:[#allocation2] sm:$0xff]
        %v762 = vld [vmem:[#allocation3] sm:$0xff]
        %v763 = vld [vmem:[#allocation4] sm:$0xff]
        %765 = vrot.lane.b32.xlu0 %v761, 112
        %v766 = vpop.permute.xlu0 %765
        %768 = vrot.lane.b32.xlu0 %v762, 112
        %v769 = vpop.permute.xlu0 %768
        %v770 = vsel %vm622, %v766, 0
        %v772 = vsel %vm622, %v769, 0
        %774 = vmatpush.xpose.msra.mxu0 0.0
        %775 = vmatpush.xpose.msra.mxu0 0.0
        %776 = vmatpush.xpose.msra.mxu0 0.0
        %777 = vmatpush.xpose.msra.mxu0 0.0
        %778 = vmatpush.xpose.msra.mxu0 0.0
        %779 = vmatpush.xpose.msra.mxu0 0.0
        %780 = vmatpush.xpose.msra.mxu0 0.0
        %781 = vmatpush.xpose.msra.mxu0 0.0
        %782 = vmatpush.xpose.msra.mxu0 0.0
        %783 = vmatpush.xpose.msra.mxu0 0.0
        %784 = vmatpush.xpose.msra.mxu0 0.0
        %785 = vmatpush.xpose.msra.mxu0 0.0
        %786 = vmatpush.xpose.msra.mxu0 0.0
        %787 = vmatpush.xpose.msra.mxu0 0.0
        %788 = vmatpush.xpose.msra.mxu0 0.0
        %789 = vmatpush.xpose.msra.mxu0 %v772
        %790 = vmatmul.f32.gmra.mxu0 %v770
        %v791 = vpop.f32.mrf.mxu0
        %v792 = vadd.f32 %v618, %v791
        %793 = vdwg.mxu0
        %v794 = vsel %vm622, %v792, -inf
        %795 = vmax.xlane.f32.xlu0 %v794
        %v796 = vpop.xlane.xlu0 %795
        %v797 = vsub.f32 %v792, %v796
        %v798 = vmul.f32 %v797, 1.442695
        %v799 = vpow.pop %v798
        %v800 = vsel %vm622, %v799, 0.0
        %801 = vadd.xlane.f32.xlu0 %v800
        %v802 = vpop.xlane.xlu0 %801
        %v803 = vrcp.pop %v802
        %v804 = vmul.f32 %v799, %v803
        %806 = vrot.lane.b32.xlu0 %v763, 112
        %v807 = vpop.permute.xlu0 %806
        %v810 = vsel %vm622, %v804, 0
        %812 = vmatpush.msra.mxu0 0.0
        %813 = vmatpush.msra.mxu0 0.0
        %814 = vmatpush.msra.mxu0 0.0
        %815 = vmatpush.msra.mxu0 0.0
        %816 = vmatpush.msra.mxu0 0.0
        %817 = vmatpush.msra.mxu0 0.0
        %818 = vmatpush.msra.mxu0 0.0
        %819 = vmatpush.msra.mxu0 0.0
        %820 = vmatpush.msra.mxu0 0.0
        %821 = vmatpush.msra.mxu0 0.0
        %822 = vmatpush.msra.mxu0 0.0
        %823 = vmatpush.msra.mxu0 0.0
        %824 = vmatpush.msra.mxu0 0.0
        %825 = vmatpush.msra.mxu0 0.0
        %826 = vmatpush.msra.mxu0 0.0
        %827 = vmatpush.msra.mxu0 %v807
        %828 = vmatmul.f32.gmra.mxu0 %v810
        %v829 = vpop.f32.mrf.mxu0
        %v830 = vadd.f32 0.0, %v829
        %831 = vdwg.mxu0
        %833 = vrot.lane.b32.xlu0 %v830, 16
        %v834 = vpop.permute.xlu0 %833
        %vm836 = vcmask 195712
        %837 = vst.msk [vmem:[#allocation5] sm:$0xff] %vm836, %v834
        %v838 = vld [vmem:[#allocation2] sm:$0xff]
        %v839 = vld [vmem:[#allocation3] sm:$0xff]
        %v840 = vld [vmem:[#allocation4] sm:$0xff]
        %842 = vrot.lane.b32.xlu0 %v838, 104
        %v843 = vpop.permute.xlu0 %842
        %845 = vrot.lane.b32.xlu0 %v839, 104
        %v846 = vpop.permute.xlu0 %845
        %v847 = vsel %vm622, %v843, 0
        %v849 = vsel %vm622, %v846, 0
        %851 = vmatpush.xpose.msra.mxu0 0.0
        %852 = vmatpush.xpose.msra.mxu0 0.0
        %853 = vmatpush.xpose.msra.mxu0 0.0
        %854 = vmatpush.xpose.msra.mxu0 0.0
        %855 = vmatpush.xpose.msra.mxu0 0.0
        %856 = vmatpush.xpose.msra.mxu0 0.0
        %857 = vmatpush.xpose.msra.mxu0 0.0
        %858 = vmatpush.xpose.msra.mxu0 0.0
        %859 = vmatpush.xpose.msra.mxu0 0.0
        %860 = vmatpush.xpose.msra.mxu0 0.0
        %861 = vmatpush.xpose.msra.mxu0 0.0
        %862 = vmatpush.xpose.msra.mxu0 0.0
        %863 = vmatpush.xpose.msra.mxu0 0.0
        %864 = vmatpush.xpose.msra.mxu0 0.0
        %865 = vmatpush.xpose.msra.mxu0 0.0
        %866 = vmatpush.xpose.msra.mxu0 %v849
        %867 = vmatmul.f32.gmra.mxu0 %v847
        %v868 = vpop.f32.mrf.mxu0
        %v869 = vadd.f32 %v618, %v868
        %870 = vdwg.mxu0
        %v871 = vsel %vm622, %v869, -inf
        %872 = vmax.xlane.f32.xlu0 %v871
        %v873 = vpop.xlane.xlu0 %872
        %v874 = vsub.f32 %v869, %v873
        %v875 = vmul.f32 %v874, 1.442695
        %v876 = vpow.pop %v875
        %v877 = vsel %vm622, %v876, 0.0
        %878 = vadd.xlane.f32.xlu0 %v877
        %v879 = vpop.xlane.xlu0 %878
        %v880 = vrcp.pop %v879
        %v881 = vmul.f32 %v876, %v880
        %883 = vrot.lane.b32.xlu0 %v840, 104
        %v884 = vpop.permute.xlu0 %883
        %v887 = vsel %vm622, %v881, 0
        %889 = vmatpush.msra.mxu0 0.0
        %890 = vmatpush.msra.mxu0 0.0
        %891 = vmatpush.msra.mxu0 0.0
        %892 = vmatpush.msra.mxu0 0.0
        %893 = vmatpush.msra.mxu0 0.0
        %894 = vmatpush.msra.mxu0 0.0
        %895 = vmatpush.msra.mxu0 0.0
        %896 = vmatpush.msra.mxu0 0.0
        %897 = vmatpush.msra.mxu0 0.0
        %898 = vmatpush.msra.mxu0 0.0
        %899 = vmatpush.msra.mxu0 0.0
        %900 = vmatpush.msra.mxu0 0.0
        %901 = vmatpush.msra.mxu0 0.0
        %902 = vmatpush.msra.mxu0 0.0
        %903 = vmatpush.msra.mxu0 0.0
        %904 = vmatpush.msra.mxu0 %v884
        %905 = vmatmul.f32.gmra.mxu0 %v887
        %v906 = vpop.f32.mrf.mxu0
        %v907 = vadd.f32 0.0, %v906
        %908 = vdwg.mxu0
        %910 = vrot.lane.b32.xlu0 %v907, 24
        %v911 = vpop.permute.xlu0 %910
        %vm913 = vcmask 261312
        %914 = vst.msk [vmem:[#allocation5] sm:$0xff] %vm913, %v911
        %v915 = vld [vmem:[#allocation5] sm:$0xff]
        %v916 = vld [vmem:[#allocation15] sm:$0xff]
        %v917 = vld [vmem:[#allocation15 + $0x8] sm:$0xff]
        %v918 = vld [vmem:[#allocation15 + $0x10] sm:$0xff]
        %v919 = vld [vmem:[#allocation15 + $0x18] sm:$0xff]
        %v921 = vsel %vm544, %v915, 0
        %923 = vmatpush.msra.mxu0 0.0
        %924 = vmatpush.msra.mxu0 0.0
        %925 = vmatpush.msra.mxu0 0.0
        %926 = vmatpush.msra.mxu0 0.0
        %927 = vmatpush.msra.mxu0 0.0
        %928 = vmatpush.msra.mxu0 0.0
        %929 = vmatpush.msra.mxu0 0.0
        %930 = vmatpush.msra.mxu0 0.0
        %931 = vmatpush.msra.mxu0 0.0
        %932 = vmatpush.msra.mxu0 0.0
        %933 = vmatpush.msra.mxu0 0.0
        %934 = vmatpush.msra.mxu0 0.0
        %935 = vmatpush.msra.mxu0 %v919
        %936 = vmatpush.msra.mxu0 %v918
        %937 = vmatpush.msra.mxu0 %v917
        %938 = vmatpush.msra.mxu0 %v916
        %939 = vmatmul.f32.gmra.mxu0 %v921
        %v940 = vpop.f32.mrf.mxu0
        %v941 = vadd.f32 0.0, %v940
        %942 = vdwg.mxu0
        %v943 = vadd.f32 %v581, %v941
        %944 = vst.msk [vmem:[%s444] sm:$0xff] %vm544, %v943
        %s945 = sand.u32 %s232, 1
        %s946 = scalar_lea.sflag [#allocation8], %s945
        %s947 = sand.u32 %s232, 1
        %s948 = smul.addr %s947, 8
        %s949 = scalar_lea.vmem [#allocation17], %s948
        // Predicated region
        $region81: #{tpu_custom_call.1} parent=51 // pred_check
          %p950 = pneg %p242
        $region82: #{tpu_custom_call.1} parent=51 // pred_check_branch
          %952 = sbr.rel (%p950) target = $region84
        $region83: #{tpu_custom_call.1} parent=51 // pred_region
          %954 = vsyncadd %s946, 0
          %s955 = sadd.s32 %s35, %s34
          %s956 = smul.addr %s955, 8
          %s957 = scalar_lea.hbm %s8, %s956
          %s959 = sshll.u32 %s949, 4
          %s960 = int_to_ptr.vmem [resolvable:$true] %s959
          %s961 = sshll.u32 %s957, 4
          %s962 = int_to_ptr.hbm [resolvable:$true] %s961
          %964 = dma.vmem_to_hbm [thread:$0]  %s960, 128, %s962, %s946
        $region84: #{tpu_custom_call.1} parent=51 // pred_fallthru
          _
      $region52: #{tpu_custom_call.1} parent=5 // pred_fallthru
        _
      %p965 = scmp.le.s32.totalorder 2, %s25
      // Predicated region
      $region85: #{tpu_custom_call.1} parent=5 // pred_check
        %p966 = pneg %p965
      $region86: #{tpu_custom_call.1} parent=5 // pred_check_branch
        %968 = sbr.rel (%p966) target = $region88
      $region87: #{tpu_custom_call.1} parent=5 // pred_region
        %s969 = ssub.s32 %s25, 2
        // Predicated region
        $region89: #{tpu_custom_call.1} parent=87 // pred_check
          %p970 = pneg %p248
        $region90: #{tpu_custom_call.1} parent=87 // pred_check_branch
          %972 = sbr.rel (%p970) target = $region92
        $region91: #{tpu_custom_call.1} parent=87 // pred_region
          %s973 = sand.u32 %s233, 1
          %s974 = scalar_lea.sflag [#allocation8], %s973
          %s975 = sand.u32 %s233, 1
          %s976 = smul.addr %s975, 8
          %s977 = scalar_lea.vmem [#allocation17], %s976
          %979 = dma.done %s974, 128
        $region92: #{tpu_custom_call.1} parent=87 // pred_fallthru
          _
      $region88: #{tpu_custom_call.1} parent=5 // pred_fallthru
        _
    $region6: #{tpu_custom_call.1} parent=1 // loop_footer
      %s29 = sadd.s32 1, %s25
    $region7: #{tpu_custom_call.1} parent=1 // loop_footer_branch
      %24 = sbr.rel target = $region3
    $region8: #{tpu_custom_call.1} parent=1 // loop_exit
      _
    %980 = vsyncpa [#allocation7], 1
    %s981 = scalar_lea.sflag [#allocation7], 1
    %982 = vsyncpa %s981, 1
    %983 = vsyncpa [#allocation10], 1
    %s984 = scalar_lea.sflag [#allocation10], 1
    %985 = vsyncpa %s984, 1
    %986 = vsyncpa [#allocation13], 1
    %987 = vsyncpa [#allocation16], 1
    %988 = vsyncpa [#allocation8], 1
    %s989 = scalar_lea.sflag [#allocation8], 1
    %990 = vsyncpa %s989, 1

</llo_original>
